<compile_context>
chip_gen: v5e
topology: v5e:2x2
jax: 0.10.0
libtpu: 0.0.40
codegen_flags: <defaults>
</compile_context>

<pallas_src>
import functools
from typing import NamedTuple

import jax
import jax.numpy as jnp
from jax.experimental import pallas as pl
from jax.experimental.pallas import tpu as pltpu

LN_EPS = 1e-5                      # torch.nn.LayerNorm default
_INV_SQRT2 = 0.7071067811865476
LANE = 128
SUBLANE = 8


def _round_up(n, m):
    return ((n + m - 1) // m) * m


def _pad2(a, rows, cols):
    """Zero-pad a 2-D array to (rows, cols)."""
    a = jnp.asarray(a, jnp.float32)
    out = jnp.zeros((rows, cols), jnp.float32)
    return out.at[: a.shape[0], : a.shape[1]].set(a)


class Dims(NamedTuple):
    img_dim: int
    hidden: int
    h2: int
    h4: int
    E: int
    vocab: int
    IDP: int
    HP: int
    H2P: int
    H4P: int
    EP: int
    VP: int


# ----------------------------- kernel -----------------------------
def moe_kernel(
    text_ref, img_ref,
    iw1_ref, iw2_ref,
    wf1_ref, rw2_ref, wf2_ref, ew2_ref, ow_ref,
    bias_ref,
    logits_ref, rweights_ref,
    *, hidden_true, img_h_true, num_experts_true,
):
    f32 = jnp.float32
    HP = text_ref.shape[1]
    H2P = iw1_ref.shape[1]
    H4P = rw2_ref.shape[0]
    EP = rw2_ref.shape[1]
    EH2 = ew2_ref.shape[0]          # E * H2P
    VP = ow_ref.shape[1]

    def masked_ln(x, w, b, n_true):
        # Padded columns of x are exactly zero, so the full-width sum equals the
        # true-width sum; normalize by the true feature count. Variance uses the
        # two-pass E[(x-mu)^2] form with padded columns masked out. gamma/beta
        # are zero in padded columns, so padded outputs stay exactly zero.
        inv_n = 1.0 / float(n_true)
        mu = jnp.sum(x, axis=-1, keepdims=True) * inv_n
        d = x - mu
        if x.shape[-1] != n_true:
            lane = jax.lax.broadcasted_iota(jnp.int32, x.shape, 1)
            d = jnp.where(lane < n_true, d, 0.0)
        var = jnp.sum(d * d, axis=-1, keepdims=True) * inv_n
        return d * jax.lax.rsqrt(var + LN_EPS) * w + b

    # Bias bank rows (static, lane-128-aligned slices of one VMEM ref).
    ib1 = bias_ref[0:1, :H2P]
    ilnw = bias_ref[1:2, :H2P]
    ilnb = bias_ref[2:3, :H2P]
    ib2 = bias_ref[3:4, :HP]
    lnw = bias_ref[4:5, :HP]
    lnb = bias_ref[5:6, :HP]
    rb2 = bias_ref[6:7, :EP]
    ob = bias_ref[7:8, :VP]
    fb1 = bias_ref[8:9, :H4P + EH2]   # [router_b1 | concat_e(expert_b1_e)]

    text = text_ref[...]
    img = img_ref[...]

    # ---- image_encoder: Linear -> LayerNorm -> ReLU -> (Dropout=id) -> Linear ----
    h = jnp.dot(img, iw1_ref[...], preferred_element_type=f32) + ib1
    h = masked_ln(h, ilnw, ilnb, img_h_true)
    h = jnp.maximum(h, 0.0)
    img_feat = jnp.dot(h, iw2_ref[...], preferred_element_type=f32) + ib2

    # ---- combine + LayerNorm ----
    combined = text + img_feat
    norm = masked_ln(combined, lnw, lnb, hidden_true)

    # ---- fused router-hidden + expert-hidden GEMM (shared LHS = norm) ----
    fused1 = jnp.dot(norm, wf1_ref[...], preferred_element_type=f32) + fb1
    rh = jnp.maximum(fused1[:, :H4P], 0.0)
    eh = fused1[:, H4P:]
    eh = 0.5 * eh * (1.0 + jax.lax.erf(eh * _INV_SQRT2))   # exact (erf) GELU

    # ---- router: Linear -> masked softmax (exact divide; tiny) ----
    rlogits = jnp.dot(rh, rw2_ref[...], preferred_element_type=f32) + rb2
    lane = jax.lax.broadcasted_iota(jnp.int32, rlogits.shape, 1)
    valid = lane < num_experts_true
    rmax = jnp.max(jnp.where(valid, rlogits, -1e30), axis=-1, keepdims=True)
    rexp = jnp.where(valid, jnp.exp(rlogits - rmax), 0.0)
    rweights = rexp / jnp.sum(rexp, axis=-1, keepdims=True)
    rweights_ref[...] = rweights                            # lane-dense (BP, EP) store

    # ---- experts, fused: per-expert scale + folded b2 via one GEMM ----
    # scale[:, e*H2P:(e+1)*H2P] = rweights[:, e]  (block-indicator columns) and
    # bfold = rweights @ stack_e(b2_e), both from a single shared-LHS matmul.
    fused2 = jnp.dot(rweights, wf2_ref[...], preferred_element_type=f32)
    scale = fused2[:, :EH2]
    bfold = fused2[:, EH2:]

    # (eh_e @ W2_e) * rw_e == (eh_e * rw_e) @ W2_e ; biases fold via bfold.
    weighted = jnp.dot(eh * scale, ew2_ref[...], preferred_element_type=f32) + bfold
    final = norm + weighted

    # ---- output head (lane-dense padded vocab) ----
    logits_ref[...] = (
        jnp.dot(final, ow_ref[...], preferred_element_type=f32) + ob
    )


# ----------------------------- one-time parameter pack -----------------------------
def pack_params(params, img_dim):
    """Pad / concatenate all weights once at init (layout plumbing only)."""
    hidden = params["ln_w"].shape[-1]
    h2 = params["img_ln_w"].shape[-1]      # image-encoder / expert hidden
    h4 = params["router_w1"].shape[-1]     # router hidden
    E = params["expert_w1"].shape[0]
    vocab = params["out_w"].shape[-1]

    IDP = _round_up(img_dim, LANE)
    HP = _round_up(hidden, LANE)
    H2P = _round_up(h2, LANE)
    H4P = _round_up(h4, LANE)
    EP = _round_up(E, LANE)
    VP = _round_up(vocab, LANE)
    EH2 = E * H2P

    dims = Dims(img_dim=img_dim, hidden=hidden, h2=h2, h4=h4, E=E, vocab=vocab,
                IDP=IDP, HP=HP, H2P=H2P, H4P=H4P, EP=EP, VP=VP)

    iw1 = _pad2(params["img_w1"], IDP, H2P)
    iw2 = _pad2(params["img_w2"], H2P, HP)

    # fused [router_w1 | concat_e(expert_w1_e)] : (HP, H4P + E*H2P)
    w_fused1 = jnp.concatenate(
        [_pad2(params["router_w1"], HP, H4P)]
        + [_pad2(params["expert_w1"][e], HP, H2P) for e in range(E)], axis=1)

    rw2 = _pad2(params["router_w2"], H4P, EP)

    # fused [block-indicator expand | stacked expert_b2] : (EP, E*H2P + HP)
    w_fused2 = jnp.zeros((EP, EH2 + HP), jnp.float32)
    for e in range(E):
        w_fused2 = w_fused2.at[e, e * H2P:(e + 1) * H2P].set(1.0)
        w_fused2 = w_fused2.at[e, EH2:EH2 + hidden].set(
            jnp.asarray(params["expert_b2"][e], jnp.float32).reshape(-1))

    ew2cat = jnp.concatenate(
        [_pad2(params["expert_w2"][e], H2P, HP) for e in range(E)], axis=0)  # (E*H2P, HP)

    ow = _pad2(params["out_w"], HP, VP)

    # ---- single bias bank: all tiny (1, N) vectors coalesced into one DMA ----
    WMAX = max(H2P, HP, EP, VP, H4P + EH2)
    NROWS = _round_up(9, SUBLANE)
    bank = jnp.zeros((NROWS, WMAX), jnp.float32)

    def setrow(b, i, vec):
        v = jnp.asarray(vec, jnp.float32).reshape(-1)
        return b.at[i, : v.shape[0]].set(v)

    bank = setrow(bank, 0, params["img_b1"])
    bank = setrow(bank, 1, params["img_ln_w"])
    bank = setrow(bank, 2, params["img_ln_b"])
    bank = setrow(bank, 3, params["img_b2"])
    bank = setrow(bank, 4, params["ln_w"])
    bank = setrow(bank, 5, params["ln_b"])
    bank = setrow(bank, 6, params["router_b2"])
    bank = setrow(bank, 7, params["out_b"])
    fb1 = jnp.zeros((H4P + EH2,), jnp.float32)
    fb1 = fb1.at[:h4].set(jnp.asarray(params["router_b1"], jnp.float32).reshape(-1))
    for e in range(E):
        fb1 = fb1.at[H4P + e * H2P: H4P + e * H2P + h2].set(
            jnp.asarray(params["expert_b1"][e], jnp.float32).reshape(-1))
    bank = bank.at[8, :H4P + EH2].set(fb1)

    pack = {
        "iw1": iw1, "iw2": iw2, "w_fused1": w_fused1, "rw2": rw2,
        "w_fused2": w_fused2, "ew2cat": ew2cat, "ow": ow, "bias_bank": bank,
    }
    return jax.block_until_ready(pack), dims


# ----------------------------- jitted forward path -----------------------------
@functools.partial(jax.jit, static_argnames=("dims",))
def _moe_forward_jit(image, text_pooled, pack, dims):
    B = image.shape[0]
    BP = _round_up(B, SUBLANE)          # sublane-dense batch (f32 (8,128) tile)

    img_flat = image.reshape(B, -1).astype(jnp.float32)
    img_p = jnp.pad(img_flat, ((0, BP - B), (0, dims.IDP - dims.img_dim)))
    text_p = jnp.pad(text_pooled.astype(jnp.float32),
                     ((0, BP - B), (0, dims.HP - dims.hidden)))

    inputs = (text_p, img_p, pack["iw1"], pack["iw2"], pack["w_fused1"],
              pack["rw2"], pack["w_fused2"], pack["ew2cat"], pack["ow"],
              pack["bias_bank"])

    EH2 = dims.E * dims.H2P
    flops = 2 * BP * (
        dims.IDP * dims.H2P + dims.H2P * dims.HP
        + dims.HP * (dims.H4P + EH2) + dims.H4P * dims.EP
        + dims.EP * (EH2 + dims.HP) + EH2 * dims.HP + dims.HP * dims.VP)
    transcendentals = BP * (EH2 + dims.EP + 4)
    in_bytes = 4 * sum(int(a.size) for a in inputs)
    out_bytes = 4 * BP * (dims.VP + dims.EP)
    # VMEM limit sized to actual footprint (+headroom), never the full 64 MiB of v7x.
    vmem_limit = int(min(max(2 * (in_bytes + out_bytes) + (2 << 20), 8 << 20), 32 << 20))

    vmem = pl.BlockSpec(memory_space=pltpu.MemorySpace.VMEM)
    kernel = functools.partial(
        moe_kernel, hidden_true=dims.hidden, img_h_true=dims.h2,
        num_experts_true=dims.E)

    logits_p, rweights_p = pl.pallas_call(
        kernel,
        out_shape=(
            jax.ShapeDtypeStruct((BP, dims.VP), jnp.float32),
            jax.ShapeDtypeStruct((BP, dims.EP), jnp.float32),
        ),
        in_specs=[vmem] * len(inputs),
        out_specs=(vmem, vmem),
        compiler_params=pltpu.CompilerParams(vmem_limit_bytes=vmem_limit),
        cost_estimate=pl.CostEstimate(
            flops=flops, transcendentals=transcendentals,
            bytes_accessed=in_bytes + out_bytes),
    )(*inputs)

    return logits_p[:B, :dims.vocab], rweights_p[:B, :dims.E]


def real_model_moe_forward(image, text_pooled, pack, dims):
    """image: (B, C, H, W) float32; text_pooled: (B, hidden) float32."""
    logits, rweights = _moe_forward_jit(image, text_pooled, pack, dims)
    return {"logits": logits, "router_weights": rweights}


# ---------------- deterministic parameter construction ----------------
def _xavier(key, fan_in, fan_out):
    bound = (6.0 / (fan_in + fan_out)) ** 0.5
    return jax.random.uniform(
        key, (fan_in, fan_out), jnp.float32, minval=-bound, maxval=bound
    )


def make_params(key, *, img_dim, hidden, num_experts, vocab_size):
    h2 = hidden // 2      # expert_hidden and image-encoder hidden
    h4 = hidden // 4      # router hidden
    keys = jax.random.split(key, 16)
    return {
        # image_encoder
        "img_w1": _xavier(keys[0], img_dim, h2),
        "img_b1": jnp.zeros((1, h2), jnp.float32),
        "img_ln_w": jnp.ones((1, h2), jnp.float32),
        "img_ln_b": jnp.zeros((1, h2), jnp.float32),
        "img_w2": _xavier(keys[1], h2, hidden),
        "img_b2": jnp.zeros((1, hidden), jnp.float32),
        # final LayerNorm
        "ln_w": jnp.ones((1, hidden), jnp.float32),
        "ln_b": jnp.zeros((1, hidden), jnp.float32),
        # router
        "router_w1": _xavier(keys[2], hidden, h4),
        "router_b1": jnp.zeros((1, h4), jnp.float32),
        "router_w2": _xavier(keys[3], h4, num_experts),
        "router_b2": jnp.zeros((1, num_experts), jnp.float32),
        # experts (stacked)
        "expert_w1": jnp.stack(
            [_xavier(keys[4 + e], hidden, h2) for e in range(num_experts)]),
        "expert_b1": jnp.zeros((num_experts, 1, h2), jnp.float32),
        "expert_w2": jnp.stack(
            [_xavier(keys[8 + e], h2, hidden) for e in range(num_experts)]),
        "expert_b2": jnp.zeros((num_experts, 1, hidden), jnp.float32),
        # output head
        "out_w": _xavier(keys[12], hidden, vocab_size),
        "out_b": jnp.zeros((1, vocab_size), jnp.float32),
    }


def _layernorm_ref(x, w, b):
    mu = jnp.mean(x, axis=-1, keepdims=True)
    var = jnp.mean((x - mu) ** 2, axis=-1, keepdims=True)
    return (x - mu) * jax.lax.rsqrt(var + LN_EPS) * w + b


def reference_forward(image, text_pooled, p):
    """Pure-JAX reference (per-expert loop, unpadded) for numerical verification."""
    B = image.shape[0]
    x = image.reshape(B, -1).astype(jnp.float32)
    h = x @ p["img_w1"] + p["img_b1"]
    h = _layernorm_ref(h, p["img_ln_w"], p["img_ln_b"])
    h = jnp.maximum(h, 0.0)
    img_feat = h @ p["img_w2"] + p["img_b2"]
    norm = _layernorm_ref(text_pooled + img_feat, p["ln_w"], p["ln_b"])
    rh = jnp.maximum(norm @ p["router_w1"] + p["router_b1"], 0.0)
    rw = jax.nn.softmax(rh @ p["router_w2"] + p["router_b2"], axis=-1)
    weighted = jnp.zeros_like(norm)
    for e in range(p["expert_w1"].shape[0]):
        eh = norm @ p["expert_w1"][e] + p["expert_b1"][e]
        eh = 0.5 * eh * (1.0 + jax.lax.erf(eh * _INV_SQRT2))
        eo = eh @ p["expert_w2"][e] + p["expert_b2"][e]
        weighted = weighted + eo * rw[:, e: e + 1]
    final = norm + weighted
    return final @ p["out_w"] + p["out_b"], rw


if __name__ == "__main__":
    # Small shapes consistent with the module's forward.
    B, C, IH, IW = 2, 3, 8, 8          # image (NCHW), stand-in for 3x224x224
    HIDDEN = 32                        # backbone hidden size stand-in
    NUM_EXPERTS = 4
    VOCAB = 64
    IMG_DIM = C * IH * IW

    root = jax.random.PRNGKey(0)
    k_img, k_text, k_params = jax.random.split(root, 3)

    image = jax.random.normal(k_img, (B, C, IH, IW), jnp.float32)
    # backbone=None branch: text_pooled = randn(B, hidden) — made deterministic here.
    text_pooled = jax.random.normal(k_text, (B, HIDDEN), jnp.float32)
    params = make_params(
        k_params, img_dim=IMG_DIM, hidden=HIDDEN,
        num_experts=NUM_EXPERTS, vocab_size=VOCAB,
    )

    # One-time padded/concatenated parameter pack (kept across calls).
    pack, dims = pack_params(params, IMG_DIM)

    out = real_model_moe_forward(image, text_pooled, pack, dims)
    jax.block_until_ready(out)

    ref_logits, ref_rw = reference_forward(image, text_pooled, params)
    assert out["logits"].shape == (B, VOCAB)
    assert out["router_weights"].shape == (B, NUM_EXPERTS)
    assert jnp.allclose(out["logits"], ref_logits, rtol=1e-4, atol=1e-4)
    assert jnp.allclose(out["router_weights"], ref_rw, rtol=1e-4, atol=1e-4)

    print("KERNEL_OK")
</pallas_src>

<mosaic_0001>
module attributes {stable_mosaic.version = 11 : i64} {
  func.func @moe_kernel(%arg0: memref<8x128xf32, #tpu.memory_space<vmem>>, %arg1: memref<8x256xf32, #tpu.memory_space<vmem>>, %arg2: memref<256x128xf32, #tpu.memory_space<vmem>>, %arg3: memref<128x128xf32, #tpu.memory_space<vmem>>, %arg4: memref<128x640xf32, #tpu.memory_space<vmem>>, %arg5: memref<128x128xf32, #tpu.memory_space<vmem>>, %arg6: memref<128x640xf32, #tpu.memory_space<vmem>>, %arg7: memref<512x128xf32, #tpu.memory_space<vmem>>, %arg8: memref<128x128xf32, #tpu.memory_space<vmem>>, %arg9: memref<16x640xf32, #tpu.memory_space<vmem>>, %arg10: memref<8x128xf32, #tpu.memory_space<vmem>>, %arg11: memref<8x128xf32, #tpu.memory_space<vmem>>) attributes {dimension_semantics = [], scalar_prefetch = 0 : i64, scratch_operands = 0 : i64, tpu.core_type = #tpu.core_type<tc>} {
    %c0 = arith.constant 0 : index
    %c0_0 = arith.constant 0 : index
    %0 = vector.load %arg9[%c0, %c0_0] : memref<16x640xf32, #tpu.memory_space<vmem>>, vector<1x128xf32>
    %c1 = arith.constant 1 : index
    %c0_1 = arith.constant 0 : index
    %1 = vector.load %arg9[%c1, %c0_1] : memref<16x640xf32, #tpu.memory_space<vmem>>, vector<1x128xf32>
    %c2 = arith.constant 2 : index
    %c0_2 = arith.constant 0 : index
    %2 = vector.load %arg9[%c2, %c0_2] : memref<16x640xf32, #tpu.memory_space<vmem>>, vector<1x128xf32>
    %c3 = arith.constant 3 : index
    %c0_3 = arith.constant 0 : index
    %3 = vector.load %arg9[%c3, %c0_3] : memref<16x640xf32, #tpu.memory_space<vmem>>, vector<1x128xf32>
    %c4 = arith.constant 4 : index
    %c0_4 = arith.constant 0 : index
    %4 = vector.load %arg9[%c4, %c0_4] : memref<16x640xf32, #tpu.memory_space<vmem>>, vector<1x128xf32>
    %c5 = arith.constant 5 : index
    %c0_5 = arith.constant 0 : index
    %5 = vector.load %arg9[%c5, %c0_5] : memref<16x640xf32, #tpu.memory_space<vmem>>, vector<1x128xf32>
    %c6 = arith.constant 6 : index
    %c0_6 = arith.constant 0 : index
    %6 = vector.load %arg9[%c6, %c0_6] : memref<16x640xf32, #tpu.memory_space<vmem>>, vector<1x128xf32>
    %c7 = arith.constant 7 : index
    %c0_7 = arith.constant 0 : index
    %7 = vector.load %arg9[%c7, %c0_7] : memref<16x640xf32, #tpu.memory_space<vmem>>, vector<1x128xf32>
    %c8 = arith.constant 8 : index
    %c0_8 = arith.constant 0 : index
    %8 = vector.load %arg9[%c8, %c0_8] : memref<16x640xf32, #tpu.memory_space<vmem>>, vector<1x640xf32>
    %c0_9 = arith.constant 0 : index
    %c0_10 = arith.constant 0 : index
    %9 = vector.load %arg0[%c0_9, %c0_10] : memref<8x128xf32, #tpu.memory_space<vmem>>, vector<8x128xf32>
    %c0_11 = arith.constant 0 : index
    %c0_12 = arith.constant 0 : index
    %10 = vector.load %arg1[%c0_11, %c0_12] : memref<8x256xf32, #tpu.memory_space<vmem>>, vector<8x256xf32>
    %c0_13 = arith.constant 0 : index
    %c0_14 = arith.constant 0 : index
    %11 = vector.load %arg2[%c0_13, %c0_14] : memref<256x128xf32, #tpu.memory_space<vmem>>, vector<256x128xf32>
    %cst = arith.constant dense<0.000000e+00> : vector<8x128xf32>
    %12 = tpu.matmul %10, %11, %cst {dimension_numbers = #tpu.dot_dimension_numbers<[1], [0], [0], [1], [0, 0, 1, 1], [], []>} : vector<8x256xf32>, vector<256x128xf32>, vector<8x128xf32> -> vector<8x128xf32>
    %13 = vector.broadcast %0 : vector<1x128xf32> to vector<8x128xf32>
    %14 = arith.addf %12, %13 : vector<8x128xf32>
    %cst_15 = arith.constant dense<0.000000e+00> : vector<8xf32>
    %15 = vector.multi_reduction <add>, %14, %cst_15 [1] : vector<8x128xf32> to vector<8xf32>
    %16 = vector.shape_cast %15 : vector<8xf32> to vector<8x1xf32>
    %cst_16 = arith.constant 6.250000e-02 : f32
    %17 = vector.broadcast %cst_16 : f32 to vector<8x1xf32>
    %18 = arith.mulf %16, %17 : vector<8x1xf32>
    %19 = vector.broadcast %18 : vector<8x1xf32> to vector<8x128xf32>
    %20 = arith.subf %14, %19 : vector<8x128xf32>
    %21 = tpu.iota {dimensions = array<i32: 1>} : vector<8x128xi32>
    %c16_i32 = arith.constant 16 : i32
    %22 = vector.broadcast %c16_i32 : i32 to vector<8x128xi32>
    %23 = arith.cmpi slt, %21, %22 : vector<8x128xi32>
    %cst_17 = arith.constant 0.000000e+00 : f32
    %24 = vector.broadcast %cst_17 : f32 to vector<8x128xf32>
    %25 = arith.select %23, %20, %24 : vector<8x128xi1>, vector<8x128xf32>
    %26 = arith.mulf %25, %25 : vector<8x128xf32>
    %cst_18 = arith.constant dense<0.000000e+00> : vector<8xf32>
    %27 = vector.multi_reduction <add>, %26, %cst_18 [1] : vector<8x128xf32> to vector<8xf32>
    %28 = vector.shape_cast %27 : vector<8xf32> to vector<8x1xf32>
    %cst_19 = arith.constant 6.250000e-02 : f32
    %29 = vector.broadcast %cst_19 : f32 to vector<8x1xf32>
    %30 = arith.mulf %28, %29 : vector<8x1xf32>
    %cst_20 = arith.constant 9.99999974E-6 : f32
    %31 = vector.broadcast %cst_20 : f32 to vector<8x1xf32>
    %32 = arith.addf %30, %31 : vector<8x1xf32>
    %33 = math.rsqrt %32 : vector<8x1xf32>
    %34 = vector.broadcast %33 : vector<8x1xf32> to vector<8x128xf32>
    %35 = arith.mulf %25, %34 : vector<8x128xf32>
    %36 = vector.broadcast %1 : vector<1x128xf32> to vector<8x128xf32>
    %37 = arith.mulf %35, %36 : vector<8x128xf32>
    %38 = vector.broadcast %2 : vector<1x128xf32> to vector<8x128xf32>
    %39 = arith.addf %37, %38 : vector<8x128xf32>
    %cst_21 = arith.constant 0.000000e+00 : f32
    %40 = vector.broadcast %cst_21 : f32 to vector<8x128xf32>
    %41 = arith.maximumf %39, %40 : vector<8x128xf32>
    %c0_22 = arith.constant 0 : index
    %c0_23 = arith.constant 0 : index
    %42 = vector.load %arg3[%c0_22, %c0_23] : memref<128x128xf32, #tpu.memory_space<vmem>>, vector<128x128xf32>
    %cst_24 = arith.constant dense<0.000000e+00> : vector<8x128xf32>
    %43 = tpu.matmul %41, %42, %cst_24 {dimension_numbers = #tpu.dot_dimension_numbers<[1], [0], [0], [1], [0, 0, 1, 1], [], []>} : vector<8x128xf32>, vector<128x128xf32>, vector<8x128xf32> -> vector<8x128xf32>
    %44 = vector.broadcast %3 : vector<1x128xf32> to vector<8x128xf32>
    %45 = arith.addf %43, %44 : vector<8x128xf32>
    %46 = arith.addf %9, %45 : vector<8x128xf32>
    %cst_25 = arith.constant dense<0.000000e+00> : vector<8xf32>
    %47 = vector.multi_reduction <add>, %46, %cst_25 [1] : vector<8x128xf32> to vector<8xf32>
    %48 = vector.shape_cast %47 : vector<8xf32> to vector<8x1xf32>
    %cst_26 = arith.constant 3.125000e-02 : f32
    %49 = vector.broadcast %cst_26 : f32 to vector<8x1xf32>
    %50 = arith.mulf %48, %49 : vector<8x1xf32>
    %51 = vector.broadcast %50 : vector<8x1xf32> to vector<8x128xf32>
    %52 = arith.subf %46, %51 : vector<8x128xf32>
    %53 = tpu.iota {dimensions = array<i32: 1>} : vector<8x128xi32>
    %c32_i32 = arith.constant 32 : i32
    %54 = vector.broadcast %c32_i32 : i32 to vector<8x128xi32>
    %55 = arith.cmpi slt, %53, %54 : vector<8x128xi32>
    %cst_27 = arith.constant 0.000000e+00 : f32
    %56 = vector.broadcast %cst_27 : f32 to vector<8x128xf32>
    %57 = arith.select %55, %52, %56 : vector<8x128xi1>, vector<8x128xf32>
    %58 = arith.mulf %57, %57 : vector<8x128xf32>
    %cst_28 = arith.constant dense<0.000000e+00> : vector<8xf32>
    %59 = vector.multi_reduction <add>, %58, %cst_28 [1] : vector<8x128xf32> to vector<8xf32>
    %60 = vector.shape_cast %59 : vector<8xf32> to vector<8x1xf32>
    %cst_29 = arith.constant 3.125000e-02 : f32
    %61 = vector.broadcast %cst_29 : f32 to vector<8x1xf32>
    %62 = arith.mulf %60, %61 : vector<8x1xf32>
    %cst_30 = arith.constant 9.99999974E-6 : f32
    %63 = vector.broadcast %cst_30 : f32 to vector<8x1xf32>
    %64 = arith.addf %62, %63 : vector<8x1xf32>
    %65 = math.rsqrt %64 : vector<8x1xf32>
    %66 = vector.broadcast %65 : vector<8x1xf32> to vector<8x128xf32>
    %67 = arith.mulf %57, %66 : vector<8x128xf32>
    %68 = vector.broadcast %4 : vector<1x128xf32> to vector<8x128xf32>
    %69 = arith.mulf %67, %68 : vector<8x128xf32>
    %70 = vector.broadcast %5 : vector<1x128xf32> to vector<8x128xf32>
    %71 = arith.addf %69, %70 : vector<8x128xf32>
    %c0_31 = arith.constant 0 : index
    %c0_32 = arith.constant 0 : index
    %72 = vector.load %arg4[%c0_31, %c0_32] : memref<128x640xf32, #tpu.memory_space<vmem>>, vector<128x640xf32>
    %cst_33 = arith.constant dense<0.000000e+00> : vector<8x640xf32>
    %73 = tpu.matmul %71, %72, %cst_33 {dimension_numbers = #tpu.dot_dimension_numbers<[1], [0], [0], [1], [0, 0, 1, 1], [], []>} : vector<8x128xf32>, vector<128x640xf32>, vector<8x640xf32> -> vector<8x640xf32>
    %74 = vector.broadcast %8 : vector<1x640xf32> to vector<8x640xf32>
    %75 = arith.addf %73, %74 : vector<8x640xf32>
    %76 = vector.extract_strided_slice %75 {offsets = [0, 0], sizes = [8, 128], strides = [1, 1]} : vector<8x640xf32> to vector<8x128xf32>
    %cst_34 = arith.constant 0.000000e+00 : f32
    %77 = vector.broadcast %cst_34 : f32 to vector<8x128xf32>
    %78 = arith.maximumf %76, %77 : vector<8x128xf32>
    %79 = vector.extract_strided_slice %75 {offsets = [0, 128], sizes = [8, 512], strides = [1, 1]} : vector<8x640xf32> to vector<8x512xf32>
    %cst_35 = arith.constant 5.000000e-01 : f32
    %80 = vector.broadcast %cst_35 : f32 to vector<8x512xf32>
    %81 = arith.mulf %80, %79 : vector<8x512xf32>
    %cst_36 = arith.constant 0.707106769 : f32
    %82 = vector.broadcast %cst_36 : f32 to vector<8x512xf32>
    %83 = arith.mulf %79, %82 : vector<8x512xf32>
    %84 = math.erf %83 : vector<8x512xf32>
    %cst_37 = arith.constant 1.000000e+00 : f32
    %85 = vector.broadcast %cst_37 : f32 to vector<8x512xf32>
    %86 = arith.addf %85, %84 : vector<8x512xf32>
    %87 = arith.mulf %81, %86 : vector<8x512xf32>
    %c0_38 = arith.constant 0 : index
    %c0_39 = arith.constant 0 : index
    %88 = vector.load %arg5[%c0_38, %c0_39] : memref<128x128xf32, #tpu.memory_space<vmem>>, vector<128x128xf32>
    %cst_40 = arith.constant dense<0.000000e+00> : vector<8x128xf32>
    %89 = tpu.matmul %78, %88, %cst_40 {dimension_numbers = #tpu.dot_dimension_numbers<[1], [0], [0], [1], [0, 0, 1, 1], [], []>} : vector<8x128xf32>, vector<128x128xf32>, vector<8x128xf32> -> vector<8x128xf32>
    %90 = vector.broadcast %6 : vector<1x128xf32> to vector<8x128xf32>
    %91 = arith.addf %89, %90 : vector<8x128xf32>
    %92 = tpu.iota {dimensions = array<i32: 1>} : vector<8x128xi32>
    %c4_i32 = arith.constant 4 : i32
    %93 = vector.broadcast %c4_i32 : i32 to vector<8x128xi32>
    %94 = arith.cmpi slt, %92, %93 : vector<8x128xi32>
    %cst_41 = arith.constant -1.000000e+30 : f32
    %95 = vector.broadcast %cst_41 : f32 to vector<8x128xf32>
    %96 = arith.select %94, %91, %95 : vector<8x128xi1>, vector<8x128xf32>
    %cst_42 = arith.constant dense<0xFF800000> : vector<8xf32>
    %97 = vector.multi_reduction <maximumf>, %96, %cst_42 [1] : vector<8x128xf32> to vector<8xf32>
    %98 = vector.shape_cast %97 : vector<8xf32> to vector<8x1xf32>
    %99 = vector.broadcast %98 : vector<8x1xf32> to vector<8x128xf32>
    %100 = arith.subf %91, %99 : vector<8x128xf32>
    %101 = math.exp %100 : vector<8x128xf32>
    %cst_43 = arith.constant 0.000000e+00 : f32
    %102 = vector.broadcast %cst_43 : f32 to vector<8x128xf32>
    %103 = arith.select %94, %101, %102 : vector<8x128xi1>, vector<8x128xf32>
    %cst_44 = arith.constant dense<0.000000e+00> : vector<8xf32>
    %104 = vector.multi_reduction <add>, %103, %cst_44 [1] : vector<8x128xf32> to vector<8xf32>
    %105 = vector.shape_cast %104 : vector<8xf32> to vector<8x1xf32>
    %106 = vector.broadcast %105 : vector<8x1xf32> to vector<8x128xf32>
    %107 = arith.divf %103, %106 : vector<8x128xf32>
    %c0_45 = arith.constant 0 : index
    %c0_46 = arith.constant 0 : index
    %108 = vector.load %arg11[%c0_45, %c0_46] : memref<8x128xf32, #tpu.memory_space<vmem>>, vector<8x128xf32>
    tpu.vector_store %arg11[%c0_45, %c0_46], %107 {strides = array<i32>} : memref<8x128xf32, #tpu.memory_space<vmem>>, vector<8x128xf32>,
    %c0_47 = arith.constant 0 : index
    %c0_48 = arith.constant 0 : index
    %109 = vector.load %arg6[%c0_47, %c0_48] : memref<128x640xf32, #tpu.memory_space<vmem>>, vector<128x640xf32>
    %cst_49 = arith.constant dense<0.000000e+00> : vector<8x640xf32>
    %110 = tpu.matmul %107, %109, %cst_49 {dimension_numbers = #tpu.dot_dimension_numbers<[1], [0], [0], [1], [0, 0, 1, 1], [], []>} : vector<8x128xf32>, vector<128x640xf32>, vector<8x640xf32> -> vector<8x640xf32>
    %111 = vector.extract_strided_slice %110 {offsets = [0, 0], sizes = [8, 512], strides = [1, 1]} : vector<8x640xf32> to vector<8x512xf32>
    %112 = vector.extract_strided_slice %110 {offsets = [0, 512], sizes = [8, 128], strides = [1, 1]} : vector<8x640xf32> to vector<8x128xf32>
    %113 = arith.mulf %87, %111 : vector<8x512xf32>
    %c0_50 = arith.constant 0 : index
    %c0_51 = arith.constant 0 : index
    %114 = vector.load %arg7[%c0_50, %c0_51] : memref<512x128xf32, #tpu.memory_space<vmem>>, vector<512x128xf32>
    %cst_52 = arith.constant dense<0.000000e+00> : vector<8x128xf32>
    %115 = tpu.matmul %113, %114, %cst_52 {dimension_numbers = #tpu.dot_dimension_numbers<[1], [0], [0], [1], [0, 0, 1, 1], [], []>} : vector<8x512xf32>, vector<512x128xf32>, vector<8x128xf32> -> vector<8x128xf32>
    %116 = arith.addf %115, %112 : vector<8x128xf32>
    %117 = arith.addf %71, %116 : vector<8x128xf32>
    %c0_53 = arith.constant 0 : index
    %c0_54 = arith.constant 0 : index
    %118 = vector.load %arg8[%c0_53, %c0_54] : memref<128x128xf32, #tpu.memory_space<vmem>>, vector<128x128xf32>
    %cst_55 = arith.constant dense<0.000000e+00> : vector<8x128xf32>
    %119 = tpu.matmul %117, %118, %cst_55 {dimension_numbers = #tpu.dot_dimension_numbers<[1], [0], [0], [1], [0, 0, 1, 1], [], []>} : vector<8x128xf32>, vector<128x128xf32>, vector<8x128xf32> -> vector<8x128xf32>
    %120 = vector.broadcast %7 : vector<1x128xf32> to vector<8x128xf32>
    %121 = arith.addf %119, %120 : vector<8x128xf32>
    %c0_56 = arith.constant 0 : index
    %c0_57 = arith.constant 0 : index
    %122 = vector.load %arg10[%c0_56, %c0_57] : memref<8x128xf32, #tpu.memory_space<vmem>>, vector<8x128xf32>
    tpu.vector_store %arg10[%c0_56, %c0_57], %121 {strides = array<i32>} : memref<8x128xf32, #tpu.memory_space<vmem>>, vector<8x128xf32>,
    return
  }
}

</mosaic_0001>

<llo_original>
// kernel: _moe_forward_jit.1
$region0: #{_moe_forward_jit.1}
  #allocation0 [shape = 'u32[]', space=smem, size = 0x4, offset = 0x4, fixed_abs, tag = 'smem constant byte address 0x4 - core index']
  #allocation1 [shape = 'u32[72,128]{1,0:T(1,128)}', space=vmem, size = 0x9000, scoped, tag = 'internal scratch']
  %s0 = inlined_call_operand.vmem [shape: f32[8,128], index: 0, kind: input, shape index: {}]
  %s1 = inlined_call_operand.vmem [shape: f32[8,256], index: 1, kind: input, shape index: {}]
  %s2 = inlined_call_operand.hbm [shape: f32[256,128], index: 2, kind: input, shape index: {}]
  %s3 = inlined_call_operand.hbm [shape: f32[128,128], index: 3, kind: input, shape index: {}]
  %s4 = inlined_call_operand.hbm [shape: f32[128,640], index: 4, kind: input, shape index: {}]
  %s5 = inlined_call_operand.hbm [shape: f32[128,128], index: 5, kind: input, shape index: {}]
  %s6 = inlined_call_operand.hbm [shape: f32[128,640], index: 6, kind: input, shape index: {}]
  %s7 = inlined_call_operand.hbm [shape: f32[512,128], index: 7, kind: input, shape index: {}]
  %s8 = inlined_call_operand.hbm [shape: f32[128,128], index: 8, kind: input, shape index: {}]
  %s9 = inlined_call_operand.vmem [shape: f32[16,640], index: 9, kind: input, shape index: {}]
  %s10 = inlined_call_operand.vmem [shape: f32[8,128], index: 10, kind: output, shape index: {0}]
  %s11 = inlined_call_operand.vmem [shape: f32[8,128], index: 11, kind: output, shape index: {1}]
  %12 = xla_tuple %s10, %s11
  %s13 = sld [smem:[#allocation0]]
  $region86: #{_moe_forward_jit.1} parent=0
    _
  %s15 = ssub.s32 1, %s13
  %s16 = scalar_select 0, %s15, %s13
  $region1: #{_moe_forward_jit.1} parent=0
    #allocation2 [shape = 'u8[131072]{0}', space=vmem, size = 0x20000, scoped, tag = 'input window, operand 2, single buffered']
    #allocation3 [shape = 's32[1]{0}', space=sflag, size = 0x4, scoped, tag = 'scoped memory for _moe_forward_jit.1']
    #allocation4 [shape = 'u8[65536]{0}', space=vmem, size = 0x10000, scoped, tag = 'input window, operand 3, single buffered']
    #allocation5 [shape = 's32[1]{0}', space=sflag, size = 0x4, scoped, tag = 'scoped memory for _moe_forward_jit.1']
    #allocation6 [shape = 'u8[327680]{0}', space=vmem, size = 0x50000, scoped, tag = 'input window, operand 4, single buffered']
    #allocation7 [shape = 'u8[65536]{0}', space=vmem, size = 0x10000, scoped, tag = 'input window, operand 5, single buffered']
    #allocation8 [shape = 's32[1]{0}', space=sflag, size = 0x4, scoped, tag = 'scoped memory for _moe_forward_jit.1']
    #allocation9 [shape = 'u8[327680]{0}', space=vmem, size = 0x50000, scoped, tag = 'input window, operand 6, single buffered']
    #allocation10 [shape = 'u8[262144]{0}', space=vmem, size = 0x40000, scoped, tag = 'input window, operand 7, single buffered']
    #allocation11 [shape = 's32[1]{0}', space=sflag, size = 0x4, scoped, tag = 'scoped memory for _moe_forward_jit.1']
    #allocation12 [shape = 'u8[65536]{0}', space=vmem, size = 0x10000, scoped, tag = 'input window, operand 8, single buffered']
    %17 = vsyncpa [#allocation3], 0
    %18 = vsyncpa [#allocation5], 0
    %19 = vsyncpa [#allocation8], 0
    %20 = vsyncpa [#allocation11], 0
    // Predicated region
    $region2: #{_moe_forward_jit.1} parent=1 // pred_check
      _
    $region3: #{_moe_forward_jit.1} parent=1 // pred_check_branch
      %22 = sbr.rel (0) target = $region5
    $region4: #{_moe_forward_jit.1} parent=1 // pred_region
      _
    $region5: #{_moe_forward_jit.1} parent=1 // pred_fallthru
      _
    // Predicated region
    $region6: #{_moe_forward_jit.1} parent=1 // pred_check
      _
    $region7: #{_moe_forward_jit.1} parent=1 // pred_check_branch
      %24 = sbr.rel (0) target = $region9
    $region8: #{_moe_forward_jit.1} parent=1 // pred_region
      _
    $region9: #{_moe_forward_jit.1} parent=1 // pred_fallthru
      _
    // Predicated region
    $region10: #{_moe_forward_jit.1} parent=1 // pred_check
      _
    $region11: #{_moe_forward_jit.1} parent=1 // pred_check_branch
      %26 = sbr.rel (0) target = $region13
    $region12: #{_moe_forward_jit.1} parent=1 // pred_region
      %28 = vsyncadd [#allocation3], 0
      %s29 = sshll.u32 %s2, 4
      %s30 = int_to_ptr.hbm [resolvable:$true] %s29
      %s31 = sshll.u32 [#allocation2], 4
      %s32 = int_to_ptr.vmem [resolvable:$true] %s31
      %37 = dma.hbm_to_vmem [thread:$0]  %s30, 4096, %s32, [#allocation3], 128, 128, 8
    $region13: #{_moe_forward_jit.1} parent=1 // pred_fallthru
      _
    // Predicated region
    $region14: #{_moe_forward_jit.1} parent=1 // pred_check
      _
    $region15: #{_moe_forward_jit.1} parent=1 // pred_check_branch
      %39 = sbr.rel (0) target = $region17
    $region16: #{_moe_forward_jit.1} parent=1 // pred_region
      %41 = vsyncadd [#allocation5], 0
      %s42 = sshll.u32 %s3, 4
      %s43 = int_to_ptr.hbm [resolvable:$true] %s42
      %s44 = sshll.u32 [#allocation4], 4
      %s45 = int_to_ptr.vmem [resolvable:$true] %s44
      %50 = dma.hbm_to_vmem [thread:$0]  %s43, 2048, %s45, [#allocation5], 128, 128, 8
    $region17: #{_moe_forward_jit.1} parent=1 // pred_fallthru
      _
    // Predicated region
    $region18: #{_moe_forward_jit.1} parent=1 // pred_check
      _
    $region19: #{_moe_forward_jit.1} parent=1 // pred_check_branch
      %52 = sbr.rel (0) target = $region21
    $region20: #{_moe_forward_jit.1} parent=1 // pred_region
      %54 = vsyncadd [#allocation5], 0
      %s55 = sshll.u32 %s4, 4
      %s56 = int_to_ptr.hbm [resolvable:$true] %s55
      %s57 = sshll.u32 [#allocation6], 4
      %s58 = int_to_ptr.vmem [resolvable:$true] %s57
      %63 = dma.hbm_to_vmem [thread:$0]  %s56, 10240, %s58, [#allocation5], 640, 640, 40
    $region21: #{_moe_forward_jit.1} parent=1 // pred_fallthru
      _
    // Predicated region
    $region22: #{_moe_forward_jit.1} parent=1 // pred_check
      _
    $region23: #{_moe_forward_jit.1} parent=1 // pred_check_branch
      %65 = sbr.rel (0) target = $region25
    $region24: #{_moe_forward_jit.1} parent=1 // pred_region
      %67 = vsyncadd [#allocation8], 0
      %s68 = sshll.u32 %s5, 4
      %s69 = int_to_ptr.hbm [resolvable:$true] %s68
      %s70 = sshll.u32 [#allocation7], 4
      %s71 = int_to_ptr.vmem [resolvable:$true] %s70
      %76 = dma.hbm_to_vmem [thread:$0]  %s69, 2048, %s71, [#allocation8], 128, 128, 8
    $region25: #{_moe_forward_jit.1} parent=1 // pred_fallthru
      _
    // Predicated region
    $region26: #{_moe_forward_jit.1} parent=1 // pred_check
      _
    $region27: #{_moe_forward_jit.1} parent=1 // pred_check_branch
      %78 = sbr.rel (0) target = $region29
    $region28: #{_moe_forward_jit.1} parent=1 // pred_region
      %80 = vsyncadd [#allocation8], 0
      %s81 = sshll.u32 %s6, 4
      %s82 = int_to_ptr.hbm [resolvable:$true] %s81
      %s83 = sshll.u32 [#allocation9], 4
      %s84 = int_to_ptr.vmem [resolvable:$true] %s83
      %89 = dma.hbm_to_vmem [thread:$0]  %s82, 10240, %s84, [#allocation8], 640, 640, 40
    $region29: #{_moe_forward_jit.1} parent=1 // pred_fallthru
      _
    // Predicated region
    $region30: #{_moe_forward_jit.1} parent=1 // pred_check
      _
    $region31: #{_moe_forward_jit.1} parent=1 // pred_check_branch
      %91 = sbr.rel (0) target = $region33
    $region32: #{_moe_forward_jit.1} parent=1 // pred_region
      %93 = vsyncadd [#allocation11], 0
      %s94 = sshll.u32 %s7, 4
      %s95 = int_to_ptr.hbm [resolvable:$true] %s94
      %s96 = sshll.u32 [#allocation10], 4
      %s97 = int_to_ptr.vmem [resolvable:$true] %s96
      %102 = dma.hbm_to_vmem [thread:$0]  %s95, 8192, %s97, [#allocation11], 128, 128, 8
    $region33: #{_moe_forward_jit.1} parent=1 // pred_fallthru
      _
    // Predicated region
    $region34: #{_moe_forward_jit.1} parent=1 // pred_check
      _
    $region35: #{_moe_forward_jit.1} parent=1 // pred_check_branch
      %104 = sbr.rel (0) target = $region37
    $region36: #{_moe_forward_jit.1} parent=1 // pred_region
      %106 = vsyncadd [#allocation11], 0
      %s107 = sshll.u32 %s8, 4
      %s108 = int_to_ptr.hbm [resolvable:$true] %s107
      %s109 = sshll.u32 [#allocation12], 4
      %s110 = int_to_ptr.vmem [resolvable:$true] %s109
      %115 = dma.hbm_to_vmem [thread:$0]  %s108, 2048, %s110, [#allocation11], 128, 128, 8
    $region37: #{_moe_forward_jit.1} parent=1 // pred_fallthru
      _
    // Predicated region
    $region38: #{_moe_forward_jit.1} parent=1 // pred_check
      _
    $region39: #{_moe_forward_jit.1} parent=1 // pred_check_branch
      %117 = sbr.rel (0) target = $region41
    $region40: #{_moe_forward_jit.1} parent=1 // pred_region
      _
    $region41: #{_moe_forward_jit.1} parent=1 // pred_fallthru
      _
    // Predicated region
    $region42: #{_moe_forward_jit.1} parent=1 // pred_check
      _
    $region43: #{_moe_forward_jit.1} parent=1 // pred_check_branch
      %119 = sbr.rel (0) target = $region45
    $region44: #{_moe_forward_jit.1} parent=1 // pred_region
      %121 = dma.done [#allocation3], 4096
    $region45: #{_moe_forward_jit.1} parent=1 // pred_fallthru
      _
    // Predicated region
    $region46: #{_moe_forward_jit.1} parent=1 // pred_check
      _
    $region47: #{_moe_forward_jit.1} parent=1 // pred_check_branch
      %123 = sbr.rel (0) target = $region49
    $region48: #{_moe_forward_jit.1} parent=1 // pred_region
      %125 = dma.done [#allocation5], 2048
    $region49: #{_moe_forward_jit.1} parent=1 // pred_fallthru
      _
    // Predicated region
    $region50: #{_moe_forward_jit.1} parent=1 // pred_check
      _
    $region51: #{_moe_forward_jit.1} parent=1 // pred_check_branch
      %127 = sbr.rel (0) target = $region53
    $region52: #{_moe_forward_jit.1} parent=1 // pred_region
      %129 = dma.done [#allocation5], 10240
    $region53: #{_moe_forward_jit.1} parent=1 // pred_fallthru
      _
    // Predicated region
    $region54: #{_moe_forward_jit.1} parent=1 // pred_check
      _
    $region55: #{_moe_forward_jit.1} parent=1 // pred_check_branch
      %131 = sbr.rel (0) target = $region57
    $region56: #{_moe_forward_jit.1} parent=1 // pred_region
      %133 = dma.done [#allocation8], 2048
    $region57: #{_moe_forward_jit.1} parent=1 // pred_fallthru
      _
    // Predicated region
    $region58: #{_moe_forward_jit.1} parent=1 // pred_check
      _
    $region59: #{_moe_forward_jit.1} parent=1 // pred_check_branch
      %135 = sbr.rel (0) target = $region61
    $region60: #{_moe_forward_jit.1} parent=1 // pred_region
      %137 = dma.done [#allocation8], 10240
    $region61: #{_moe_forward_jit.1} parent=1 // pred_fallthru
      _
    // Predicated region
    $region62: #{_moe_forward_jit.1} parent=1 // pred_check
      _
    $region63: #{_moe_forward_jit.1} parent=1 // pred_check_branch
      %139 = sbr.rel (0) target = $region65
    $region64: #{_moe_forward_jit.1} parent=1 // pred_region
      %141 = dma.done [#allocation11], 8192
    $region65: #{_moe_forward_jit.1} parent=1 // pred_fallthru
      _
    // Predicated region
    $region66: #{_moe_forward_jit.1} parent=1 // pred_check
      _
    $region67: #{_moe_forward_jit.1} parent=1 // pred_check_branch
      %143 = sbr.rel (0) target = $region69
    $region68: #{_moe_forward_jit.1} parent=1 // pred_region
      %145 = dma.done [#allocation11], 2048
    $region69: #{_moe_forward_jit.1} parent=1 // pred_fallthru
      _
    %v146 = vld [vmem:[%s9] ss:$0 sm:$0xff]
    %v147 = vld [vmem:[%s9 + $0x1] ss:$0 sm:$0xff]
    %v148 = vld [vmem:[%s9 + $0x2] ss:$0 sm:$0xff]
    %v149 = vld [vmem:[%s9 + $0x3] ss:$0 sm:$0xff]
    %v150 = vld [vmem:[%s9 + $0x4] ss:$0 sm:$0xff]
    %v151 = vld [vmem:[%s9 + $0x5] ss:$0 sm:$0xff]
    %v152 = vld [vmem:[%s9 + $0x6] ss:$0 sm:$0xff]
    %v153 = vld [vmem:[%s9 + $0x7] ss:$0 sm:$0xff]
    %s154 = scalar_lea.vmem %s9, 40
    %v155 = vld [vmem:[%s154] ss:$8 sm:$0xf]
    %v156 = vld [vmem:[%s154] ss:$8 sm:$0x10]
    %v157 = vor.u32 %v155, %v156
    %v158 = vld [vmem:[%s0] sm:$0xff]
    %v159 = vld [vmem:[%s1] sm:$0xff]
    %v160 = vld [vmem:[%s1 + $0x8] sm:$0xff]
    %v161 = vld [vmem:[#allocation2] sm:$0xff]
    %v162 = vld [vmem:[#allocation2 + $0x8] sm:$0xff]
    %v163 = vld [vmem:[#allocation2 + $0x10] sm:$0xff]
    %v164 = vld [vmem:[#allocation2 + $0x18] sm:$0xff]
    %v165 = vld [vmem:[#allocation2 + $0x20] sm:$0xff]
    %v166 = vld [vmem:[#allocation2 + $0x28] sm:$0xff]
    %v167 = vld [vmem:[#allocation2 + $0x30] sm:$0xff]
    %v168 = vld [vmem:[#allocation2 + $0x38] sm:$0xff]
    %v169 = vld [vmem:[#allocation2 + $0x40] sm:$0xff]
    %v170 = vld [vmem:[#allocation2 + $0x48] sm:$0xff]
    %v171 = vld [vmem:[#allocation2 + $0x50] sm:$0xff]
    %v172 = vld [vmem:[#allocation2 + $0x58] sm:$0xff]
    %v173 = vld [vmem:[#allocation2 + $0x60] sm:$0xff]
    %v174 = vld [vmem:[#allocation2 + $0x68] sm:$0xff]
    %v175 = vld [vmem:[#allocation2 + $0x70] sm:$0xff]
    %v176 = vld [vmem:[#allocation2 + $0x78] sm:$0xff]
    %v177 = vld [vmem:[#allocation2 + $0x80] sm:$0xff]
    %v178 = vld [vmem:[#allocation2 + $0x88] sm:$0xff]
    %v179 = vld [vmem:[#allocation2 + $0x90] sm:$0xff]
    %v180 = vld [vmem:[#allocation2 + $0x98] sm:$0xff]
    %v181 = vld [vmem:[#allocation2 + $0xa0] sm:$0xff]
    %v182 = vld [vmem:[#allocation2 + $0xa8] sm:$0xff]
    %v183 = vld [vmem:[#allocation2 + $0xb0] sm:$0xff]
    %v184 = vld [vmem:[#allocation2 + $0xb8] sm:$0xff]
    %v185 = vld [vmem:[#allocation2 + $0xc0] sm:$0xff]
    %v186 = vld [vmem:[#allocation2 + $0xc8] sm:$0xff]
    %v187 = vld [vmem:[#allocation2 + $0xd0] sm:$0xff]
    %v188 = vld [vmem:[#allocation2 + $0xd8] sm:$0xff]
    %v189 = vld [vmem:[#allocation2 + $0xe0] sm:$0xff]
    %v190 = vld [vmem:[#allocation2 + $0xe8] sm:$0xff]
    %v191 = vld [vmem:[#allocation2 + $0xf0] sm:$0xff]
    %v192 = vld [vmem:[#allocation2 + $0xf8] sm:$0xff]
    %193 = vmatpush.msra.mxu0 %v176
    %194 = vmatpush.msra.mxu0 %v175
    %195 = vmatpush.msra.mxu0 %v174
    %196 = vmatpush.msra.mxu0 %v173
    %197 = vmatpush.msra.mxu0 %v172
    %198 = vmatpush.msra.mxu0 %v171
    %199 = vmatpush.msra.mxu0 %v170
    %200 = vmatpush.msra.mxu0 %v169
    %201 = vmatpush.msra.mxu0 %v168
    %202 = vmatpush.msra.mxu0 %v167
    %203 = vmatpush.msra.mxu0 %v166
    %204 = vmatpush.msra.mxu0 %v165
    %205 = vmatpush.msra.mxu0 %v164
    %206 = vmatpush.msra.mxu0 %v163
    %207 = vmatpush.msra.mxu0 %v162
    %208 = vmatpush.msra.mxu0 %v161
    %209 = vmatmul.f32.gmra.mxu0 %v159
    %v210 = vpop.f32.mrf.mxu0
    %v211 = vadd.f32 %v146, %v210
    %212 = vdwg.mxu0
    %213 = vmatpush.msra.mxu0 %v192
    %214 = vmatpush.msra.mxu0 %v191
    %215 = vmatpush.msra.mxu0 %v190
    %216 = vmatpush.msra.mxu0 %v189
    %217 = vmatpush.msra.mxu0 %v188
    %218 = vmatpush.msra.mxu0 %v187
    %219 = vmatpush.msra.mxu0 %v186
    %220 = vmatpush.msra.mxu0 %v185
    %221 = vmatpush.msra.mxu0 %v184
    %222 = vmatpush.msra.mxu0 %v183
    %223 = vmatpush.msra.mxu0 %v182
    %224 = vmatpush.msra.mxu0 %v181
    %225 = vmatpush.msra.mxu0 %v180
    %226 = vmatpush.msra.mxu0 %v179
    %227 = vmatpush.msra.mxu0 %v178
    %228 = vmatpush.msra.mxu0 %v177
    %229 = vmatmul.f32.gmra.mxu0 %v160
    %v230 = vpop.f32.mrf.mxu0
    %v231 = vadd.f32 %v211, %v230
    %232 = vdwg.mxu0
    %233 = vadd.xlane.f32.xlu0 %v231
    %v234 = vpop.xlane.xlu0 %233
    %v235 = vmul.f32 %v234, 0.0625
    %v236 = vsub.f32 %v231, %v235
    %v237 = vlaneseq
    %v238 = vand.u32 %v237, 127
    %vm239 = vcmp.lt.s32.totalorder %v238, 16
    %v240 = vsel %vm239, %v236, 0.0
    %v241 = vmul.f32 %v240, %v240
    %242 = vadd.xlane.f32.xlu0 %v241
    %v243 = vpop.xlane.xlu0 %242
    %v244 = vmul.f32 %v243, 0.0625
    %v245 = vadd.f32 %v244, 1e-05
    %v246 = vrsqrt.pop %v245
    %v247 = vmul.f32 %v246, %v245
    %v248 = vmul.f32 %v247, %v246
    %v249 = vmul.f32 0.5, %v248
    %v250 = vsub.f32 1.5, %v249
    %v251 = vmul.f32 %v246, %v250
    %vm252 = vweird.f32 %v245
    %vm253 = vweird.f32 %v246
    %vm254 = vmor %vm252, %vm253
    %v255 = vsel %vm254, %v246, %v251
    %v256 = vmul.f32 %v240, %v255
    %v257 = vmul.f32 %v256, %v147
    %v258 = vadd.f32 %v257, %v148
    %v259 = vmax.f32 %v258, 0.0
    %v260 = vld [vmem:[#allocation4] sm:$0xff]
    %v261 = vld [vmem:[#allocation4 + $0x8] sm:$0xff]
    %v262 = vld [vmem:[#allocation4 + $0x10] sm:$0xff]
    %v263 = vld [vmem:[#allocation4 + $0x18] sm:$0xff]
    %v264 = vld [vmem:[#allocation4 + $0x20] sm:$0xff]
    %v265 = vld [vmem:[#allocation4 + $0x28] sm:$0xff]
    %v266 = vld [vmem:[#allocation4 + $0x30] sm:$0xff]
    %v267 = vld [vmem:[#allocation4 + $0x38] sm:$0xff]
    %v268 = vld [vmem:[#allocation4 + $0x40] sm:$0xff]
    %v269 = vld [vmem:[#allocation4 + $0x48] sm:$0xff]
    %v270 = vld [vmem:[#allocation4 + $0x50] sm:$0xff]
    %v271 = vld [vmem:[#allocation4 + $0x58] sm:$0xff]
    %v272 = vld [vmem:[#allocation4 + $0x60] sm:$0xff]
    %v273 = vld [vmem:[#allocation4 + $0x68] sm:$0xff]
    %v274 = vld [vmem:[#allocation4 + $0x70] sm:$0xff]
    %v275 = vld [vmem:[#allocation4 + $0x78] sm:$0xff]
    %276 = vmatpush.msra.mxu0 %v275
    %277 = vmatpush.msra.mxu0 %v274
    %278 = vmatpush.msra.mxu0 %v273
    %279 = vmatpush.msra.mxu0 %v272
    %280 = vmatpush.msra.mxu0 %v271
    %281 = vmatpush.msra.mxu0 %v270
    %282 = vmatpush.msra.mxu0 %v269
    %283 = vmatpush.msra.mxu0 %v268
    %284 = vmatpush.msra.mxu0 %v267
    %285 = vmatpush.msra.mxu0 %v266
    %286 = vmatpush.msra.mxu0 %v265
    %287 = vmatpush.msra.mxu0 %v264
    %288 = vmatpush.msra.mxu0 %v263
    %289 = vmatpush.msra.mxu0 %v262
    %290 = vmatpush.msra.mxu0 %v261
    %291 = vmatpush.msra.mxu0 %v260
    %292 = vmatmul.f32.gmra.mxu0 %v259
    %v293 = vpop.f32.mrf.mxu0
    %v294 = vadd.f32 %v149, %v293
    %295 = vdwg.mxu0
    %v296 = vadd.f32 %v158, %v294
    %297 = vadd.xlane.f32.xlu0 %v296
    %v298 = vpop.xlane.xlu0 %297
    %v299 = vmul.f32 %v298, 0.03125
    %v300 = vsub.f32 %v296, %v299
    %vm301 = vcmp.lt.s32.totalorder %v238, 32
    %v302 = vsel %vm301, %v300, 0.0
    %v303 = vmul.f32 %v302, %v302
    %304 = vadd.xlane.f32.xlu0 %v303
    %v305 = vpop.xlane.xlu0 %304
    %v306 = vmul.f32 %v305, 0.03125
    %v307 = vadd.f32 %v306, 1e-05
    %v308 = vrsqrt.pop %v307
    %v309 = vmul.f32 %v308, %v307
    %v310 = vmul.f32 %v309, %v308
    %v311 = vmul.f32 0.5, %v310
    %v312 = vsub.f32 1.5, %v311
    %v313 = vmul.f32 %v308, %v312
    %vm314 = vweird.f32 %v307
    %vm315 = vweird.f32 %v308
    %vm316 = vmor %vm314, %vm315
    %v317 = vsel %vm316, %v308, %v313
    %v318 = vmul.f32 %v302, %v317
    %v319 = vmul.f32 %v318, %v150
    %v320 = vadd.f32 %v319, %v151
    %v321 = vld [vmem:[#allocation6] sm:$0xff]
    %v322 = vld [vmem:[#allocation6 + $0x8] sm:$0xff]
    %v323 = vld [vmem:[#allocation6 + $0x10] sm:$0xff]
    %v324 = vld [vmem:[#allocation6 + $0x18] sm:$0xff]
    %v325 = vld [vmem:[#allocation6 + $0x20] sm:$0xff]
    %v326 = vld [vmem:[#allocation6 + $0x28] sm:$0xff]
    %v327 = vld [vmem:[#allocation6 + $0x30] sm:$0xff]
    %v328 = vld [vmem:[#allocation6 + $0x38] sm:$0xff]
    %v329 = vld [vmem:[#allocation6 + $0x40] sm:$0xff]
    %v330 = vld [vmem:[#allocation6 + $0x48] sm:$0xff]
    %v331 = vld [vmem:[#allocation6 + $0x50] sm:$0xff]
    %v332 = vld [vmem:[#allocation6 + $0x58] sm:$0xff]
    %v333 = vld [vmem:[#allocation6 + $0x60] sm:$0xff]
    %v334 = vld [vmem:[#allocation6 + $0x68] sm:$0xff]
    %v335 = vld [vmem:[#allocation6 + $0x70] sm:$0xff]
    %v336 = vld [vmem:[#allocation6 + $0x78] sm:$0xff]
    %v337 = vld [vmem:[#allocation6 + $0x80] sm:$0xff]
    %v338 = vld [vmem:[#allocation6 + $0x88] sm:$0xff]
    %v339 = vld [vmem:[#allocation6 + $0x90] sm:$0xff]
    %v340 = vld [vmem:[#allocation6 + $0x98] sm:$0xff]
    %v341 = vld [vmem:[#allocation6 + $0xa0] sm:$0xff]
    %v342 = vld [vmem:[#allocation6 + $0xa8] sm:$0xff]
    %v343 = vld [vmem:[#allocation6 + $0xb0] sm:$0xff]
    %v344 = vld [vmem:[#allocation6 + $0xb8] sm:$0xff]
    %v345 = vld [vmem:[#allocation6 + $0xc0] sm:$0xff]
    %v346 = vld [vmem:[#allocation6 + $0xc8] sm:$0xff]
    %v347 = vld [vmem:[#allocation6 + $0xd0] sm:$0xff]
    %v348 = vld [vmem:[#allocation6 + $0xd8] sm:$0xff]
    %v349 = vld [vmem:[#allocation6 + $0xe0] sm:$0xff]
    %v350 = vld [vmem:[#allocation6 + $0xe8] sm:$0xff]
    %v351 = vld [vmem:[#allocation6 + $0xf0] sm:$0xff]
    %v352 = vld [vmem:[#allocation6 + $0xf8] sm:$0xff]
    %v353 = vld [vmem:[#allocation6 + $0x100] sm:$0xff]
    %v354 = vld [vmem:[#allocation6 + $0x108] sm:$0xff]
    %v355 = vld [vmem:[#allocation6 + $0x110] sm:$0xff]
    %v356 = vld [vmem:[#allocation6 + $0x118] sm:$0xff]
    %v357 = vld [vmem:[#allocation6 + $0x120] sm:$0xff]
    %v358 = vld [vmem:[#allocation6 + $0x128] sm:$0xff]
    %v359 = vld [vmem:[#allocation6 + $0x130] sm:$0xff]
    %v360 = vld [vmem:[#allocation6 + $0x138] sm:$0xff]
    %v361 = vld [vmem:[#allocation6 + $0x140] sm:$0xff]
    %v362 = vld [vmem:[#allocation6 + $0x148] sm:$0xff]
    %v363 = vld [vmem:[#allocation6 + $0x150] sm:$0xff]
    %v364 = vld [vmem:[#allocation6 + $0x158] sm:$0xff]
    %v365 = vld [vmem:[#allocation6 + $0x160] sm:$0xff]
    %v366 = vld [vmem:[#allocation6 + $0x168] sm:$0xff]
    %v367 = vld [vmem:[#allocation6 + $0x170] sm:$0xff]
    %v368 = vld [vmem:[#allocation6 + $0x178] sm:$0xff]
    %v369 = vld [vmem:[#allocation6 + $0x180] sm:$0xff]
    %v370 = vld [vmem:[#allocation6 + $0x188] sm:$0xff]
    %v371 = vld [vmem:[#allocation6 + $0x190] sm:$0xff]
    %v372 = vld [vmem:[#allocation6 + $0x198] sm:$0xff]
    %v373 = vld [vmem:[#allocation6 + $0x1a0] sm:$0xff]
    %v374 = vld [vmem:[#allocation6 + $0x1a8] sm:$0xff]
    %v375 = vld [vmem:[#allocation6 + $0x1b0] sm:$0xff]
    %v376 = vld [vmem:[#allocation6 + $0x1b8] sm:$0xff]
    %v377 = vld [vmem:[#allocation6 + $0x1c0] sm:$0xff]
    %v378 = vld [vmem:[#allocation6 + $0x1c8] sm:$0xff]
    %v379 = vld [vmem:[#allocation6 + $0x1d0] sm:$0xff]
    %v380 = vld [vmem:[#allocation6 + $0x1d8] sm:$0xff]
    %v381 = vld [vmem:[#allocation6 + $0x1e0] sm:$0xff]
    %v382 = vld [vmem:[#allocation6 + $0x1e8] sm:$0xff]
    %v383 = vld [vmem:[#allocation6 + $0x1f0] sm:$0xff]
    %v384 = vld [vmem:[#allocation6 + $0x1f8] sm:$0xff]
    %v385 = vld [vmem:[#allocation6 + $0x200] sm:$0xff]
    %v386 = vld [vmem:[#allocation6 + $0x208] sm:$0xff]
    %v387 = vld [vmem:[#allocation6 + $0x210] sm:$0xff]
    %v388 = vld [vmem:[#allocation6 + $0x218] sm:$0xff]
    %v389 = vld [vmem:[#allocation6 + $0x220] sm:$0xff]
    %v390 = vld [vmem:[#allocation6 + $0x228] sm:$0xff]
    %v391 = vld [vmem:[#allocation6 + $0x230] sm:$0xff]
    %v392 = vld [vmem:[#allocation6 + $0x238] sm:$0xff]
    %v393 = vld [vmem:[#allocation6 + $0x240] sm:$0xff]
    %v394 = vld [vmem:[#allocation6 + $0x248] sm:$0xff]
    %v395 = vld [vmem:[#allocation6 + $0x250] sm:$0xff]
    %v396 = vld [vmem:[#allocation6 + $0x258] sm:$0xff]
    %v397 = vld [vmem:[#allocation6 + $0x260] sm:$0xff]
    %v398 = vld [vmem:[#allocation6 + $0x268] sm:$0xff]
    %v399 = vld [vmem:[#allocation6 + $0x270] sm:$0xff]
    %v400 = vld [vmem:[#allocation6 + $0x278] sm:$0xff]
    %v402 = vperm.slane %v157, 0
    %v403 = vperm.slane %v157, 1
    %v404 = vperm.slane %v157, 2
    %v405 = vperm.slane %v157, 3
    %v406 = vperm.slane %v157, 4
    %412 = vmatpush.msra.mxu0 %v396
    %413 = vmatpush.msra.mxu0 %v391
    %414 = vmatpush.msra.mxu0 %v386
    %415 = vmatpush.msra.mxu0 %v381
    %416 = vmatpush.msra.mxu0 %v376
    %417 = vmatpush.msra.mxu0 %v371
    %418 = vmatpush.msra.mxu0 %v366
    %419 = vmatpush.msra.mxu0 %v361
    %420 = vmatpush.msra.mxu0 %v356
    %421 = vmatpush.msra.mxu0 %v351
    %422 = vmatpush.msra.mxu0 %v346
    %423 = vmatpush.msra.mxu0 %v341
    %424 = vmatpush.msra.mxu0 %v336
    %425 = vmatpush.msra.mxu0 %v331
    %426 = vmatpush.msra.mxu0 %v326
    %427 = vmatpush.msra.mxu0 %v321
    %428 = vmatmul.f32.gmra.mxu0 %v320
    %v429 = vpop.f32.mrf.mxu0
    %v430 = vadd.f32 %v402, %v429
    %431 = vdwg.mxu0
    %432 = vmatpush.msra.mxu0 %v397
    %433 = vmatpush.msra.mxu0 %v392
    %434 = vmatpush.msra.mxu0 %v387
    %435 = vmatpush.msra.mxu0 %v382
    %436 = vmatpush.msra.mxu0 %v377
    %437 = vmatpush.msra.mxu0 %v372
    %438 = vmatpush.msra.mxu0 %v367
    %439 = vmatpush.msra.mxu0 %v362
    %440 = vmatpush.msra.mxu0 %v357
    %441 = vmatpush.msra.mxu0 %v352
    %442 = vmatpush.msra.mxu0 %v347
    %443 = vmatpush.msra.mxu0 %v342
    %444 = vmatpush.msra.mxu0 %v337
    %445 = vmatpush.msra.mxu0 %v332
    %446 = vmatpush.msra.mxu0 %v327
    %447 = vmatpush.msra.mxu0 %v322
    %448 = vmatmul.f32.gmra.mxu0 %v320
    %v449 = vpop.f32.mrf.mxu0
    %v450 = vadd.f32 %v403, %v449
    %451 = vdwg.mxu0
    %452 = vmatpush.msra.mxu0 %v398
    %453 = vmatpush.msra.mxu0 %v393
    %454 = vmatpush.msra.mxu0 %v388
    %455 = vmatpush.msra.mxu0 %v383
    %456 = vmatpush.msra.mxu0 %v378
    %457 = vmatpush.msra.mxu0 %v373
    %458 = vmatpush.msra.mxu0 %v368
    %459 = vmatpush.msra.mxu0 %v363
    %460 = vmatpush.msra.mxu0 %v358
    %461 = vmatpush.msra.mxu0 %v353
    %462 = vmatpush.msra.mxu0 %v348
    %463 = vmatpush.msra.mxu0 %v343
    %464 = vmatpush.msra.mxu0 %v338
    %465 = vmatpush.msra.mxu0 %v333
    %466 = vmatpush.msra.mxu0 %v328
    %467 = vmatpush.msra.mxu0 %v323
    %468 = vmatmul.f32.gmra.mxu0 %v320
    %v469 = vpop.f32.mrf.mxu0
    %v470 = vadd.f32 %v404, %v469
    %471 = vdwg.mxu0
    %472 = vmatpush.msra.mxu0 %v399
    %473 = vmatpush.msra.mxu0 %v394
    %474 = vmatpush.msra.mxu0 %v389
    %475 = vmatpush.msra.mxu0 %v384
    %476 = vmatpush.msra.mxu0 %v379
    %477 = vmatpush.msra.mxu0 %v374
    %478 = vmatpush.msra.mxu0 %v369
    %479 = vmatpush.msra.mxu0 %v364
    %480 = vmatpush.msra.mxu0 %v359
    %481 = vmatpush.msra.mxu0 %v354
    %482 = vmatpush.msra.mxu0 %v349
    %483 = vmatpush.msra.mxu0 %v344
    %484 = vmatpush.msra.mxu0 %v339
    %485 = vmatpush.msra.mxu0 %v334
    %486 = vmatpush.msra.mxu0 %v329
    %487 = vmatpush.msra.mxu0 %v324
    %488 = vmatmul.f32.gmra.mxu0 %v320
    %v489 = vpop.f32.mrf.mxu0
    %v490 = vadd.f32 %v405, %v489
    %491 = vdwg.mxu0
    %492 = vmatpush.msra.mxu0 %v400
    %493 = vmatpush.msra.mxu0 %v395
    %494 = vmatpush.msra.mxu0 %v390
    %495 = vmatpush.msra.mxu0 %v385
    %496 = vmatpush.msra.mxu0 %v380
    %497 = vmatpush.msra.mxu0 %v375
    %498 = vmatpush.msra.mxu0 %v370
    %499 = vmatpush.msra.mxu0 %v365
    %500 = vmatpush.msra.mxu0 %v360
    %501 = vmatpush.msra.mxu0 %v355
    %502 = vmatpush.msra.mxu0 %v350
    %503 = vmatpush.msra.mxu0 %v345
    %504 = vmatpush.msra.mxu0 %v340
    %505 = vmatpush.msra.mxu0 %v335
    %506 = vmatpush.msra.mxu0 %v330
    %507 = vmatpush.msra.mxu0 %v325
    %508 = vmatmul.f32.gmra.mxu0 %v320
    %v509 = vpop.f32.mrf.mxu0
    %v510 = vadd.f32 %v406, %v509
    %511 = vdwg.mxu0
    %v512 = vmax.f32 %v430, 0.0
    %v513 = vmul.f32 %v450, 0.5
    %v514 = vmul.f32 %v470, 0.5
    %v515 = vmul.f32 %v490, 0.5
    %v516 = vmul.f32 %v510, 0.5
    %v517 = vmul.f32 %v450, 0.70710677
    %v518 = vmul.f32 %v470, 0.70710677
    %v519 = vmul.f32 %v490, 0.70710677
    %v520 = vmul.f32 %v510, 0.70710677
    %v521 = vmul.f32 %v517, %v517
    %v522 = vmin.f32 16.0, %v521
    %v523 = vmul.f32 %v522, 2.1237322e-06
    %v524 = vadd.f32 %v523, 0.00028619796
    %v525 = vmul.f32 %v522, %v524
    %v526 = vadd.f32 %v525, 0.0036580483
    %v527 = vmul.f32 %v522, %v526
    %v528 = vadd.f32 %v527, 0.05243302
    %v529 = vmul.f32 %v522, %v528
    %v530 = vadd.f32 %v529, 0.18741608
    %v531 = vmul.f32 %v522, %v530
    %v532 = vadd.f32 %v531, 1.1283791
    %v533 = vmul.f32 %v517, %v532
    %v534 = vmul.f32 %v522, 3.8918573e-05
    %v535 = vadd.f32 %v534, 0.001143296
    %v536 = vmul.f32 %v522, %v535
    %v537 = vadd.f32 %v536, 0.014752088
    %v538 = vmul.f32 %v522, %v537
    %v539 = vadd.f32 %v538, 0.112945676
    %v540 = vmul.f32 %v522, %v539
    %v541 = vadd.f32 %v540, 0.4994258
    %v542 = vmul.f32 %v522, %v541
    %v543 = vadd.f32 %v542, 1.0
    %v544 = vrcp.pop %v543
    %v545 = vmul.f32 %v543, %v544
    %v546 = vsub.f32 1.0, %v545
    %v547 = vmul.f32 %v544, %v546
    %v548 = vadd.f32 %v544, %v547
    %vm549 = vweird.f32 %v543
    %vm550 = vweird.f32 %v544
    %vm551 = vmor %vm549, %vm550
    %v552 = vsel %vm551, %v544, %v548
    %v553 = vand.u32 2147483647, %v543
    %vm554 = vcmp.eq.f32.partialorder %v553, 8.507059e+37
    %v555 = vand.u32 %v543, 2147483648
    %v556 = vor.u32 1.1754944e-38, %v555
    %v557 = vsel %vm554, %v556, %v552
    %v558 = vmul.f32 %v533, %v557
    %v559 = vmin.f32 %v558, 1.0
    %v560 = vmax.f32 %v559, -1.0
    %v561 = vmul.f32 %v518, %v518
    %v562 = vmin.f32 16.0, %v561
    %v563 = vmul.f32 %v562, 2.1237322e-06
    %v564 = vadd.f32 %v563, 0.00028619796
    %v565 = vmul.f32 %v562, %v564
    %v566 = vadd.f32 %v565, 0.0036580483
    %v567 = vmul.f32 %v562, %v566
    %v568 = vadd.f32 %v567, 0.05243302
    %v569 = vmul.f32 %v562, %v568
    %v570 = vadd.f32 %v569, 0.18741608
    %v571 = vmul.f32 %v562, %v570
    %v572 = vadd.f32 %v571, 1.1283791
    %v573 = vmul.f32 %v518, %v572
    %v574 = vmul.f32 %v562, 3.8918573e-05
    %v575 = vadd.f32 %v574, 0.001143296
    %v576 = vmul.f32 %v562, %v575
    %v577 = vadd.f32 %v576, 0.014752088
    %v578 = vmul.f32 %v562, %v577
    %v579 = vadd.f32 %v578, 0.112945676
    %v580 = vmul.f32 %v562, %v579
    %v581 = vadd.f32 %v580, 0.4994258
    %v582 = vmul.f32 %v562, %v581
    %v583 = vadd.f32 %v582, 1.0
    %v584 = vrcp.pop %v583
    %v585 = vmul.f32 %v583, %v584
    %v586 = vsub.f32 1.0, %v585
    %v587 = vmul.f32 %v584, %v586
    %v588 = vadd.f32 %v584, %v587
    %vm589 = vweird.f32 %v583
    %vm590 = vweird.f32 %v584
    %vm591 = vmor %vm589, %vm590
    %v592 = vsel %vm591, %v584, %v588
    %v593 = vand.u32 2147483647, %v583
    %vm594 = vcmp.eq.f32.partialorder %v593, 8.507059e+37
    %v595 = vand.u32 %v583, 2147483648
    %v596 = vor.u32 1.1754944e-38, %v595
    %v597 = vsel %vm594, %v596, %v592
    %v598 = vmul.f32 %v573, %v597
    %v599 = vmin.f32 %v598, 1.0
    %v600 = vmax.f32 %v599, -1.0
    %v601 = vmul.f32 %v519, %v519
    %v602 = vmin.f32 16.0, %v601
    %v603 = vmul.f32 %v602, 2.1237322e-06
    %v604 = vadd.f32 %v603, 0.00028619796
    %v605 = vmul.f32 %v602, %v604
    %v606 = vadd.f32 %v605, 0.0036580483
    %v607 = vmul.f32 %v602, %v606
    %v608 = vadd.f32 %v607, 0.05243302
    %v609 = vmul.f32 %v602, %v608
    %v610 = vadd.f32 %v609, 0.18741608
    %v611 = vmul.f32 %v602, %v610
    %v612 = vadd.f32 %v611, 1.1283791
    %v613 = vmul.f32 %v519, %v612
    %v614 = vmul.f32 %v602, 3.8918573e-05
    %v615 = vadd.f32 %v614, 0.001143296
    %v616 = vmul.f32 %v602, %v615
    %v617 = vadd.f32 %v616, 0.014752088
    %v618 = vmul.f32 %v602, %v617
    %v619 = vadd.f32 %v618, 0.112945676
    %v620 = vmul.f32 %v602, %v619
    %v621 = vadd.f32 %v620, 0.4994258
    %v622 = vmul.f32 %v602, %v621
    %v623 = vadd.f32 %v622, 1.0
    %v624 = vrcp.pop %v623
    %v625 = vmul.f32 %v623, %v624
    %v626 = vsub.f32 1.0, %v625
    %v627 = vmul.f32 %v624, %v626
    %v628 = vadd.f32 %v624, %v627
    %vm629 = vweird.f32 %v623
    %vm630 = vweird.f32 %v624
    %vm631 = vmor %vm629, %vm630
    %v632 = vsel %vm631, %v624, %v628
    %v633 = vand.u32 2147483647, %v623
    %vm634 = vcmp.eq.f32.partialorder %v633, 8.507059e+37
    %v635 = vand.u32 %v623, 2147483648
    %v636 = vor.u32 1.1754944e-38, %v635
    %v637 = vsel %vm634, %v636, %v632
    %v638 = vmul.f32 %v613, %v637
    %v639 = vmin.f32 %v638, 1.0
    %v640 = vmax.f32 %v639, -1.0
    %v641 = vmul.f32 %v520, %v520
    %v642 = vmin.f32 16.0, %v641
    %v643 = vmul.f32 %v642, 2.1237322e-06
    %v644 = vadd.f32 %v643, 0.00028619796
    %v645 = vmul.f32 %v642, %v644
    %v646 = vadd.f32 %v645, 0.0036580483
    %v647 = vmul.f32 %v642, %v646
    %v648 = vadd.f32 %v647, 0.05243302
    %v649 = vmul.f32 %v642, %v648
    %v650 = vadd.f32 %v649, 0.18741608
    %v651 = vmul.f32 %v642, %v650
    %v652 = vadd.f32 %v651, 1.1283791
    %v653 = vmul.f32 %v520, %v652
    %v654 = vmul.f32 %v642, 3.8918573e-05
    %v655 = vadd.f32 %v654, 0.001143296
    %v656 = vmul.f32 %v642, %v655
    %v657 = vadd.f32 %v656, 0.014752088
    %v658 = vmul.f32 %v642, %v657
    %v659 = vadd.f32 %v658, 0.112945676
    %v660 = vmul.f32 %v642, %v659
    %v661 = vadd.f32 %v660, 0.4994258
    %v662 = vmul.f32 %v642, %v661
    %v663 = vadd.f32 %v662, 1.0
    %v664 = vrcp.pop %v663
    %v665 = vmul.f32 %v663, %v664
    %v666 = vsub.f32 1.0, %v665
    %v667 = vmul.f32 %v664, %v666
    %v668 = vadd.f32 %v664, %v667
    %vm669 = vweird.f32 %v663
    %vm670 = vweird.f32 %v664
    %vm671 = vmor %vm669, %vm670
    %v672 = vsel %vm671, %v664, %v668
    %v673 = vand.u32 2147483647, %v663
    %vm674 = vcmp.eq.f32.partialorder %v673, 8.507059e+37
    %v675 = vand.u32 %v663, 2147483648
    %v676 = vor.u32 1.1754944e-38, %v675
    %v677 = vsel %vm674, %v676, %v672
    %v678 = vmul.f32 %v653, %v677
    %v679 = vmin.f32 %v678, 1.0
    %v680 = vmax.f32 %v679, -1.0
    %v681 = vadd.f32 %v560, 1.0
    %v682 = vadd.f32 %v600, 1.0
    %v683 = vadd.f32 %v640, 1.0
    %v684 = vadd.f32 %v680, 1.0
    %v685 = vmul.f32 %v513, %v681
    %v686 = vmul.f32 %v514, %v682
    %v687 = vmul.f32 %v515, %v683
    %v688 = vmul.f32 %v516, %v684
    %v689 = vld [vmem:[#allocation7] sm:$0xff]
    %v690 = vld [vmem:[#allocation7 + $0x8] sm:$0xff]
    %v691 = vld [vmem:[#allocation7 + $0x10] sm:$0xff]
    %v692 = vld [vmem:[#allocation7 + $0x18] sm:$0xff]
    %v693 = vld [vmem:[#allocation7 + $0x20] sm:$0xff]
    %v694 = vld [vmem:[#allocation7 + $0x28] sm:$0xff]
    %v695 = vld [vmem:[#allocation7 + $0x30] sm:$0xff]
    %v696 = vld [vmem:[#allocation7 + $0x38] sm:$0xff]
    %v697 = vld [vmem:[#allocation7 + $0x40] sm:$0xff]
    %v698 = vld [vmem:[#allocation7 + $0x48] sm:$0xff]
    %v699 = vld [vmem:[#allocation7 + $0x50] sm:$0xff]
    %v700 = vld [vmem:[#allocation7 + $0x58] sm:$0xff]
    %v701 = vld [vmem:[#allocation7 + $0x60] sm:$0xff]
    %v702 = vld [vmem:[#allocation7 + $0x68] sm:$0xff]
    %v703 = vld [vmem:[#allocation7 + $0x70] sm:$0xff]
    %v704 = vld [vmem:[#allocation7 + $0x78] sm:$0xff]
    %705 = vmatpush.msra.mxu0 %v704
    %706 = vmatpush.msra.mxu0 %v703
    %707 = vmatpush.msra.mxu0 %v702
    %708 = vmatpush.msra.mxu0 %v701
    %709 = vmatpush.msra.mxu0 %v700
    %710 = vmatpush.msra.mxu0 %v699
    %711 = vmatpush.msra.mxu0 %v698
    %712 = vmatpush.msra.mxu0 %v697
    %713 = vmatpush.msra.mxu0 %v696
    %714 = vmatpush.msra.mxu0 %v695
    %715 = vmatpush.msra.mxu0 %v694
    %716 = vmatpush.msra.mxu0 %v693
    %717 = vmatpush.msra.mxu0 %v692
    %718 = vmatpush.msra.mxu0 %v691
    %719 = vmatpush.msra.mxu0 %v690
    %720 = vmatpush.msra.mxu0 %v689
    %721 = vmatmul.f32.gmra.mxu0 %v512
    %v722 = vpop.f32.mrf.mxu0
    %v723 = vadd.f32 %v152, %v722
    %724 = vdwg.mxu0
    %vm725 = vcmp.lt.s32.totalorder %v238, 4
    %v726 = vsel %vm725, %v723, -1e+30
    %727 = vmax.xlane.f32.xlu0 %v726
    %v728 = vpop.xlane.xlu0 %727
    %v729 = vsub.f32 %v723, %v728
    %v730 = vmul.f32 %v729, 1.442695
    %v731 = vpow.pop %v730
    %v732 = vsel %vm725, %v731, 0.0
    %733 = vadd.xlane.f32.xlu0 %v732
    %v734 = vpop.xlane.xlu0 %733
    %v735 = vrcp.pop %v734
    %v736 = vmul.f32 %v734, %v735
    %v737 = vsub.f32 1.0, %v736
    %v738 = vmul.f32 %v735, %v737
    %v739 = vadd.f32 %v735, %v738
    %vm740 = vweird.f32 %v734
    %vm741 = vweird.f32 %v735
    %vm742 = vmor %vm740, %vm741
    %v743 = vsel %vm742, %v735, %v739
    %v744 = vand.u32 2147483647, %v734
    %vm745 = vcmp.eq.f32.partialorder %v744, 8.507059e+37
    %v746 = vand.u32 %v734, 2147483648
    %v747 = vor.u32 1.1754944e-38, %v746
    %v748 = vsel %vm745, %v747, %v743
    %v749 = vmul.f32 %v732, %v748
    %750 = vst [vmem:[%s11] sm:$0xff] %v749
    %v751 = vld [vmem:[#allocation9] sm:$0xff]
    %v752 = vld [vmem:[#allocation9 + $0x8] sm:$0xff]
    %v753 = vld [vmem:[#allocation9 + $0x10] sm:$0xff]
    %v754 = vld [vmem:[#allocation9 + $0x18] sm:$0xff]
    %v755 = vld [vmem:[#allocation9 + $0x20] sm:$0xff]
    %v756 = vld [vmem:[#allocation9 + $0x28] sm:$0xff]
    %v757 = vld [vmem:[#allocation9 + $0x30] sm:$0xff]
    %v758 = vld [vmem:[#allocation9 + $0x38] sm:$0xff]
    %v759 = vld [vmem:[#allocation9 + $0x40] sm:$0xff]
    %v760 = vld [vmem:[#allocation9 + $0x48] sm:$0xff]
    %v761 = vld [vmem:[#allocation9 + $0x50] sm:$0xff]
    %v762 = vld [vmem:[#allocation9 + $0x58] sm:$0xff]
    %v763 = vld [vmem:[#allocation9 + $0x60] sm:$0xff]
    %v764 = vld [vmem:[#allocation9 + $0x68] sm:$0xff]
    %v765 = vld [vmem:[#allocation9 + $0x70] sm:$0xff]
    %v766 = vld [vmem:[#allocation9 + $0x78] sm:$0xff]
    %v767 = vld [vmem:[#allocation9 + $0x80] sm:$0xff]
    %v768 = vld [vmem:[#allocation9 + $0x88] sm:$0xff]
    %v769 = vld [vmem:[#allocation9 + $0x90] sm:$0xff]
    %v770 = vld [vmem:[#allocation9 + $0x98] sm:$0xff]
    %v771 = vld [vmem:[#allocation9 + $0xa0] sm:$0xff]
    %v772 = vld [vmem:[#allocation9 + $0xa8] sm:$0xff]
    %v773 = vld [vmem:[#allocation9 + $0xb0] sm:$0xff]
    %v774 = vld [vmem:[#allocation9 + $0xb8] sm:$0xff]
    %v775 = vld [vmem:[#allocation9 + $0xc0] sm:$0xff]
    %v776 = vld [vmem:[#allocation9 + $0xc8] sm:$0xff]
    %v777 = vld [vmem:[#allocation9 + $0xd0] sm:$0xff]
    %v778 = vld [vmem:[#allocation9 + $0xd8] sm:$0xff]
    %v779 = vld [vmem:[#allocation9 + $0xe0] sm:$0xff]
    %v780 = vld [vmem:[#allocation9 + $0xe8] sm:$0xff]
    %v781 = vld [vmem:[#allocation9 + $0xf0] sm:$0xff]
    %v782 = vld [vmem:[#allocation9 + $0xf8] sm:$0xff]
    %v783 = vld [vmem:[#allocation9 + $0x100] sm:$0xff]
    %v784 = vld [vmem:[#allocation9 + $0x108] sm:$0xff]
    %v785 = vld [vmem:[#allocation9 + $0x110] sm:$0xff]
    %v786 = vld [vmem:[#allocation9 + $0x118] sm:$0xff]
    %v787 = vld [vmem:[#allocation9 + $0x120] sm:$0xff]
    %v788 = vld [vmem:[#allocation9 + $0x128] sm:$0xff]
    %v789 = vld [vmem:[#allocation9 + $0x130] sm:$0xff]
    %v790 = vld [vmem:[#allocation9 + $0x138] sm:$0xff]
    %v791 = vld [vmem:[#allocation9 + $0x140] sm:$0xff]
    %v792 = vld [vmem:[#allocation9 + $0x148] sm:$0xff]
    %v793 = vld [vmem:[#allocation9 + $0x150] sm:$0xff]
    %v794 = vld [vmem:[#allocation9 + $0x158] sm:$0xff]
    %v795 = vld [vmem:[#allocation9 + $0x160] sm:$0xff]
    %v796 = vld [vmem:[#allocation9 + $0x168] sm:$0xff]
    %v797 = vld [vmem:[#allocation9 + $0x170] sm:$0xff]
    %v798 = vld [vmem:[#allocation9 + $0x178] sm:$0xff]
    %v799 = vld [vmem:[#allocation9 + $0x180] sm:$0xff]
    %v800 = vld [vmem:[#allocation9 + $0x188] sm:$0xff]
    %v801 = vld [vmem:[#allocation9 + $0x190] sm:$0xff]
    %v802 = vld [vmem:[#allocation9 + $0x198] sm:$0xff]
    %v803 = vld [vmem:[#allocation9 + $0x1a0] sm:$0xff]
    %v804 = vld [vmem:[#allocation9 + $0x1a8] sm:$0xff]
    %v805 = vld [vmem:[#allocation9 + $0x1b0] sm:$0xff]
    %v806 = vld [vmem:[#allocation9 + $0x1b8] sm:$0xff]
    %v807 = vld [vmem:[#allocation9 + $0x1c0] sm:$0xff]
    %v808 = vld [vmem:[#allocation9 + $0x1c8] sm:$0xff]
    %v809 = vld [vmem:[#allocation9 + $0x1d0] sm:$0xff]
    %v810 = vld [vmem:[#allocation9 + $0x1d8] sm:$0xff]
    %v811 = vld [vmem:[#allocation9 + $0x1e0] sm:$0xff]
    %v812 = vld [vmem:[#allocation9 + $0x1e8] sm:$0xff]
    %v813 = vld [vmem:[#allocation9 + $0x1f0] sm:$0xff]
    %v814 = vld [vmem:[#allocation9 + $0x1f8] sm:$0xff]
    %v815 = vld [vmem:[#allocation9 + $0x200] sm:$0xff]
    %v816 = vld [vmem:[#allocation9 + $0x208] sm:$0xff]
    %v817 = vld [vmem:[#allocation9 + $0x210] sm:$0xff]
    %v818 = vld [vmem:[#allocation9 + $0x218] sm:$0xff]
    %v819 = vld [vmem:[#allocation9 + $0x220] sm:$0xff]
    %v820 = vld [vmem:[#allocation9 + $0x228] sm:$0xff]
    %v821 = vld [vmem:[#allocation9 + $0x230] sm:$0xff]
    %v822 = vld [vmem:[#allocation9 + $0x238] sm:$0xff]
    %v823 = vld [vmem:[#allocation9 + $0x240] sm:$0xff]
    %v824 = vld [vmem:[#allocation9 + $0x248] sm:$0xff]
    %v825 = vld [vmem:[#allocation9 + $0x250] sm:$0xff]
    %v826 = vld [vmem:[#allocation9 + $0x258] sm:$0xff]
    %v827 = vld [vmem:[#allocation9 + $0x260] sm:$0xff]
    %v828 = vld [vmem:[#allocation9 + $0x268] sm:$0xff]
    %v829 = vld [vmem:[#allocation9 + $0x270] sm:$0xff]
    %v830 = vld [vmem:[#allocation9 + $0x278] sm:$0xff]
    %831 = vmatpush.msra.mxu0 %v826
    %832 = vmatpush.msra.mxu0 %v821
    %833 = vmatpush.msra.mxu0 %v816
    %834 = vmatpush.msra.mxu0 %v811
    %835 = vmatpush.msra.mxu0 %v806
    %836 = vmatpush.msra.mxu0 %v801
    %837 = vmatpush.msra.mxu0 %v796
    %838 = vmatpush.msra.mxu0 %v791
    %839 = vmatpush.msra.mxu0 %v786
    %840 = vmatpush.msra.mxu0 %v781
    %841 = vmatpush.msra.mxu0 %v776
    %842 = vmatpush.msra.mxu0 %v771
    %843 = vmatpush.msra.mxu0 %v766
    %844 = vmatpush.msra.mxu0 %v761
    %845 = vmatpush.msra.mxu0 %v756
    %846 = vmatpush.msra.mxu0 %v751
    %847 = vmatmul.f32.gmra.mxu0 %v749
    %v848 = vpop.f32.mrf.mxu0
    %v849 = vadd.f32 0.0, %v848
    %850 = vdwg.mxu0
    %851 = vmatpush.msra.mxu0 %v827
    %852 = vmatpush.msra.mxu0 %v822
    %853 = vmatpush.msra.mxu0 %v817
    %854 = vmatpush.msra.mxu0 %v812
    %855 = vmatpush.msra.mxu0 %v807
    %856 = vmatpush.msra.mxu0 %v802
    %857 = vmatpush.msra.mxu0 %v797
    %858 = vmatpush.msra.mxu0 %v792
    %859 = vmatpush.msra.mxu0 %v787
    %860 = vmatpush.msra.mxu0 %v782
    %861 = vmatpush.msra.mxu0 %v777
    %862 = vmatpush.msra.mxu0 %v772
    %863 = vmatpush.msra.mxu0 %v767
    %864 = vmatpush.msra.mxu0 %v762
    %865 = vmatpush.msra.mxu0 %v757
    %866 = vmatpush.msra.mxu0 %v752
    %867 = vmatmul.f32.gmra.mxu0 %v749
    %v868 = vpop.f32.mrf.mxu0
    %v869 = vadd.f32 0.0, %v868
    %870 = vdwg.mxu0
    %871 = vmatpush.msra.mxu0 %v828
    %872 = vmatpush.msra.mxu0 %v823
    %873 = vmatpush.msra.mxu0 %v818
    %874 = vmatpush.msra.mxu0 %v813
    %875 = vmatpush.msra.mxu0 %v808
    %876 = vmatpush.msra.mxu0 %v803
    %877 = vmatpush.msra.mxu0 %v798
    %878 = vmatpush.msra.mxu0 %v793
    %879 = vmatpush.msra.mxu0 %v788
    %880 = vmatpush.msra.mxu0 %v783
    %881 = vmatpush.msra.mxu0 %v778
    %882 = vmatpush.msra.mxu0 %v773
    %883 = vmatpush.msra.mxu0 %v768
    %884 = vmatpush.msra.mxu0 %v763
    %885 = vmatpush.msra.mxu0 %v758
    %886 = vmatpush.msra.mxu0 %v753
    %887 = vmatmul.f32.gmra.mxu0 %v749
    %v888 = vpop.f32.mrf.mxu0
    %v889 = vadd.f32 0.0, %v888
    %890 = vdwg.mxu0
    %891 = vmatpush.msra.mxu0 %v829
    %892 = vmatpush.msra.mxu0 %v824
    %893 = vmatpush.msra.mxu0 %v819
    %894 = vmatpush.msra.mxu0 %v814
    %895 = vmatpush.msra.mxu0 %v809
    %896 = vmatpush.msra.mxu0 %v804
    %897 = vmatpush.msra.mxu0 %v799
    %898 = vmatpush.msra.mxu0 %v794
    %899 = vmatpush.msra.mxu0 %v789
    %900 = vmatpush.msra.mxu0 %v784
    %901 = vmatpush.msra.mxu0 %v779
    %902 = vmatpush.msra.mxu0 %v774
    %903 = vmatpush.msra.mxu0 %v769
    %904 = vmatpush.msra.mxu0 %v764
    %905 = vmatpush.msra.mxu0 %v759
    %906 = vmatpush.msra.mxu0 %v754
    %907 = vmatmul.f32.gmra.mxu0 %v749
    %v908 = vpop.f32.mrf.mxu0
    %v909 = vadd.f32 0.0, %v908
    %910 = vdwg.mxu0
    %911 = vmatpush.msra.mxu0 %v830
    %912 = vmatpush.msra.mxu0 %v825
    %913 = vmatpush.msra.mxu0 %v820
    %914 = vmatpush.msra.mxu0 %v815
    %915 = vmatpush.msra.mxu0 %v810
    %916 = vmatpush.msra.mxu0 %v805
    %917 = vmatpush.msra.mxu0 %v800
    %918 = vmatpush.msra.mxu0 %v795
    %919 = vmatpush.msra.mxu0 %v790
    %920 = vmatpush.msra.mxu0 %v785
    %921 = vmatpush.msra.mxu0 %v780
    %922 = vmatpush.msra.mxu0 %v775
    %923 = vmatpush.msra.mxu0 %v770
    %924 = vmatpush.msra.mxu0 %v765
    %925 = vmatpush.msra.mxu0 %v760
    %926 = vmatpush.msra.mxu0 %v755
    %927 = vmatmul.f32.gmra.mxu0 %v749
    %v928 = vpop.f32.mrf.mxu0
    %v929 = vadd.f32 0.0, %v928
    %930 = vdwg.mxu0
    %v931 = vmul.f32 %v685, %v849
    %v932 = vmul.f32 %v686, %v869
    %v933 = vmul.f32 %v687, %v889
    %v934 = vmul.f32 %v688, %v909
    %v935 = vld [vmem:[#allocation10] sm:$0xff]
    %v936 = vld [vmem:[#allocation10 + $0x8] sm:$0xff]
    %v937 = vld [vmem:[#allocation10 + $0x10] sm:$0xff]
    %v938 = vld [vmem:[#allocation10 + $0x18] sm:$0xff]
    %v939 = vld [vmem:[#allocation10 + $0x20] sm:$0xff]
    %v940 = vld [vmem:[#allocation10 + $0x28] sm:$0xff]
    %v941 = vld [vmem:[#allocation10 + $0x30] sm:$0xff]
    %v942 = vld [vmem:[#allocation10 + $0x38] sm:$0xff]
    %v943 = vld [vmem:[#allocation10 + $0x40] sm:$0xff]
    %v944 = vld [vmem:[#allocation10 + $0x48] sm:$0xff]
    %v945 = vld [vmem:[#allocation10 + $0x50] sm:$0xff]
    %v946 = vld [vmem:[#allocation10 + $0x58] sm:$0xff]
    %v947 = vld [vmem:[#allocation10 + $0x60] sm:$0xff]
    %v948 = vld [vmem:[#allocation10 + $0x68] sm:$0xff]
    %v949 = vld [vmem:[#allocation10 + $0x70] sm:$0xff]
    %v950 = vld [vmem:[#allocation10 + $0x78] sm:$0xff]
    %v951 = vld [vmem:[#allocation10 + $0x80] sm:$0xff]
    %v952 = vld [vmem:[#allocation10 + $0x88] sm:$0xff]
    %v953 = vld [vmem:[#allocation10 + $0x90] sm:$0xff]
    %v954 = vld [vmem:[#allocation10 + $0x98] sm:$0xff]
    %v955 = vld [vmem:[#allocation10 + $0xa0] sm:$0xff]
    %v956 = vld [vmem:[#allocation10 + $0xa8] sm:$0xff]
    %v957 = vld [vmem:[#allocation10 + $0xb0] sm:$0xff]
    %v958 = vld [vmem:[#allocation10 + $0xb8] sm:$0xff]
    %v959 = vld [vmem:[#allocation10 + $0xc0] sm:$0xff]
    %v960 = vld [vmem:[#allocation10 + $0xc8] sm:$0xff]
    %v961 = vld [vmem:[#allocation10 + $0xd0] sm:$0xff]
    %v962 = vld [vmem:[#allocation10 + $0xd8] sm:$0xff]
    %v963 = vld [vmem:[#allocation10 + $0xe0] sm:$0xff]
    %v964 = vld [vmem:[#allocation10 + $0xe8] sm:$0xff]
    %v965 = vld [vmem:[#allocation10 + $0xf0] sm:$0xff]
    %v966 = vld [vmem:[#allocation10 + $0xf8] sm:$0xff]
    %v967 = vld [vmem:[#allocation10 + $0x100] sm:$0xff]
    %v968 = vld [vmem:[#allocation10 + $0x108] sm:$0xff]
    %v969 = vld [vmem:[#allocation10 + $0x110] sm:$0xff]
    %v970 = vld [vmem:[#allocation10 + $0x118] sm:$0xff]
    %v971 = vld [vmem:[#allocation10 + $0x120] sm:$0xff]
    %v972 = vld [vmem:[#allocation10 + $0x128] sm:$0xff]
    %v973 = vld [vmem:[#allocation10 + $0x130] sm:$0xff]
    %v974 = vld [vmem:[#allocation10 + $0x138] sm:$0xff]
    %v975 = vld [vmem:[#allocation10 + $0x140] sm:$0xff]
    %v976 = vld [vmem:[#allocation10 + $0x148] sm:$0xff]
    %v977 = vld [vmem:[#allocation10 + $0x150] sm:$0xff]
    %v978 = vld [vmem:[#allocation10 + $0x158] sm:$0xff]
    %v979 = vld [vmem:[#allocation10 + $0x160] sm:$0xff]
    %v980 = vld [vmem:[#allocation10 + $0x168] sm:$0xff]
    %v981 = vld [vmem:[#allocation10 + $0x170] sm:$0xff]
    %v982 = vld [vmem:[#allocation10 + $0x178] sm:$0xff]
    %v983 = vld [vmem:[#allocation10 + $0x180] sm:$0xff]
    %v984 = vld [vmem:[#allocation10 + $0x188] sm:$0xff]
    %v985 = vld [vmem:[#allocation10 + $0x190] sm:$0xff]
    %v986 = vld [vmem:[#allocation10 + $0x198] sm:$0xff]
    %v987 = vld [vmem:[#allocation10 + $0x1a0] sm:$0xff]
    %v988 = vld [vmem:[#allocation10 + $0x1a8] sm:$0xff]
    %v989 = vld [vmem:[#allocation10 + $0x1b0] sm:$0xff]
    %v990 = vld [vmem:[#allocation10 + $0x1b8] sm:$0xff]
    %v991 = vld [vmem:[#allocation10 + $0x1c0] sm:$0xff]
    %v992 = vld [vmem:[#allocation10 + $0x1c8] sm:$0xff]
    %v993 = vld [vmem:[#allocation10 + $0x1d0] sm:$0xff]
    %v994 = vld [vmem:[#allocation10 + $0x1d8] sm:$0xff]
    %v995 = vld [vmem:[#allocation10 + $0x1e0] sm:$0xff]
    %v996 = vld [vmem:[#allocation10 + $0x1e8] sm:$0xff]
    %v997 = vld [vmem:[#allocation10 + $0x1f0] sm:$0xff]
    %v998 = vld [vmem:[#allocation10 + $0x1f8] sm:$0xff]
    %999 = vmatpush.msra.mxu0 %v950
    %1000 = vmatpush.msra.mxu0 %v949
    %1001 = vmatpush.msra.mxu0 %v948
    %1002 = vmatpush.msra.mxu0 %v947
    %1003 = vmatpush.msra.mxu0 %v946
    %1004 = vmatpush.msra.mxu0 %v945
    %1005 = vmatpush.msra.mxu0 %v944
    %1006 = vmatpush.msra.mxu0 %v943
    %1007 = vmatpush.msra.mxu0 %v942
    %1008 = vmatpush.msra.mxu0 %v941
    %1009 = vmatpush.msra.mxu0 %v940
    %1010 = vmatpush.msra.mxu0 %v939
    %1011 = vmatpush.msra.mxu0 %v938
    %1012 = vmatpush.msra.mxu0 %v937
    %1013 = vmatpush.msra.mxu0 %v936
    %1014 = vmatpush.msra.mxu0 %v935
    %1015 = vmatmul.f32.gmra.mxu0 %v931
    %v1016 = vpop.f32.mrf.mxu0
    %v1017 = vadd.f32 %v929, %v1016
    %1018 = vdwg.mxu0
    %1019 = vmatpush.msra.mxu0 %v966
    %1020 = vmatpush.msra.mxu0 %v965
    %1021 = vmatpush.msra.mxu0 %v964
    %1022 = vmatpush.msra.mxu0 %v963
    %1023 = vmatpush.msra.mxu0 %v962
    %1024 = vmatpush.msra.mxu0 %v961
    %1025 = vmatpush.msra.mxu0 %v960
    %1026 = vmatpush.msra.mxu0 %v959
    %1027 = vmatpush.msra.mxu0 %v958
    %1028 = vmatpush.msra.mxu0 %v957
    %1029 = vmatpush.msra.mxu0 %v956
    %1030 = vmatpush.msra.mxu0 %v955
    %1031 = vmatpush.msra.mxu0 %v954
    %1032 = vmatpush.msra.mxu0 %v953
    %1033 = vmatpush.msra.mxu0 %v952
    %1034 = vmatpush.msra.mxu0 %v951
    %1035 = vmatmul.f32.gmra.mxu0 %v932
    %v1036 = vpop.f32.mrf.mxu0
    %v1037 = vadd.f32 %v1017, %v1036
    %1038 = vdwg.mxu0
    %1039 = vmatpush.msra.mxu0 %v982
    %1040 = vmatpush.msra.mxu0 %v981
    %1041 = vmatpush.msra.mxu0 %v980
    %1042 = vmatpush.msra.mxu0 %v979
    %1043 = vmatpush.msra.mxu0 %v978
    %1044 = vmatpush.msra.mxu0 %v977
    %1045 = vmatpush.msra.mxu0 %v976
    %1046 = vmatpush.msra.mxu0 %v975
    %1047 = vmatpush.msra.mxu0 %v974
    %1048 = vmatpush.msra.mxu0 %v973
    %1049 = vmatpush.msra.mxu0 %v972
    %1050 = vmatpush.msra.mxu0 %v971
    %1051 = vmatpush.msra.mxu0 %v970
    %1052 = vmatpush.msra.mxu0 %v969
    %1053 = vmatpush.msra.mxu0 %v968
    %1054 = vmatpush.msra.mxu0 %v967
    %1055 = vmatmul.f32.gmra.mxu0 %v933
    %v1056 = vpop.f32.mrf.mxu0
    %v1057 = vadd.f32 %v1037, %v1056
    %1058 = vdwg.mxu0
    %1059 = vmatpush.msra.mxu0 %v998
    %1060 = vmatpush.msra.mxu0 %v997
    %1061 = vmatpush.msra.mxu0 %v996
    %1062 = vmatpush.msra.mxu0 %v995
    %1063 = vmatpush.msra.mxu0 %v994
    %1064 = vmatpush.msra.mxu0 %v993
    %1065 = vmatpush.msra.mxu0 %v992
    %1066 = vmatpush.msra.mxu0 %v991
    %1067 = vmatpush.msra.mxu0 %v990
    %1068 = vmatpush.msra.mxu0 %v989
    %1069 = vmatpush.msra.mxu0 %v988
    %1070 = vmatpush.msra.mxu0 %v987
    %1071 = vmatpush.msra.mxu0 %v986
    %1072 = vmatpush.msra.mxu0 %v985
    %1073 = vmatpush.msra.mxu0 %v984
    %1074 = vmatpush.msra.mxu0 %v983
    %1075 = vmatmul.f32.gmra.mxu0 %v934
    %v1076 = vpop.f32.mrf.mxu0
    %v1077 = vadd.f32 %v1057, %v1076
    %1078 = vdwg.mxu0
    %v1079 = vadd.f32 %v320, %v1077
    %v1080 = vld [vmem:[#allocation12] sm:$0xff]
    %v1081 = vld [vmem:[#allocation12 + $0x8] sm:$0xff]
    %v1082 = vld [vmem:[#allocation12 + $0x10] sm:$0xff]
    %v1083 = vld [vmem:[#allocation12 + $0x18] sm:$0xff]
    %v1084 = vld [vmem:[#allocation12 + $0x20] sm:$0xff]
    %v1085 = vld [vmem:[#allocation12 + $0x28] sm:$0xff]
    %v1086 = vld [vmem:[#allocation12 + $0x30] sm:$0xff]
    %v1087 = vld [vmem:[#allocation12 + $0x38] sm:$0xff]
    %v1088 = vld [vmem:[#allocation12 + $0x40] sm:$0xff]
    %v1089 = vld [vmem:[#allocation12 + $0x48] sm:$0xff]
    %v1090 = vld [vmem:[#allocation12 + $0x50] sm:$0xff]
    %v1091 = vld [vmem:[#allocation12 + $0x58] sm:$0xff]
    %v1092 = vld [vmem:[#allocation12 + $0x60] sm:$0xff]
    %v1093 = vld [vmem:[#allocation12 + $0x68] sm:$0xff]
    %v1094 = vld [vmem:[#allocation12 + $0x70] sm:$0xff]
    %v1095 = vld [vmem:[#allocation12 + $0x78] sm:$0xff]
    %1096 = vmatpush.msra.mxu0 %v1095
    %1097 = vmatpush.msra.mxu0 %v1094
    %1098 = vmatpush.msra.mxu0 %v1093
    %1099 = vmatpush.msra.mxu0 %v1092
    %1100 = vmatpush.msra.mxu0 %v1091
    %1101 = vmatpush.msra.mxu0 %v1090
    %1102 = vmatpush.msra.mxu0 %v1089
    %1103 = vmatpush.msra.mxu0 %v1088
    %1104 = vmatpush.msra.mxu0 %v1087
    %1105 = vmatpush.msra.mxu0 %v1086
    %1106 = vmatpush.msra.mxu0 %v1085
    %1107 = vmatpush.msra.mxu0 %v1084
    %1108 = vmatpush.msra.mxu0 %v1083
    %1109 = vmatpush.msra.mxu0 %v1082
    %1110 = vmatpush.msra.mxu0 %v1081
    %1111 = vmatpush.msra.mxu0 %v1080
    %1112 = vmatmul.f32.gmra.mxu0 %v1079
    %v1113 = vpop.f32.mrf.mxu0
    %v1114 = vadd.f32 %v153, %v1113
    %1115 = vdwg.mxu0
    %1116 = vst [vmem:[%s10] sm:$0xff] %v1114
    // Predicated region
    $region70: #{_moe_forward_jit.1} parent=1 // pred_check
      _
    $region71: #{_moe_forward_jit.1} parent=1 // pred_check_branch
      %1118 = sbr.rel (0) target = $region73
    $region72: #{_moe_forward_jit.1} parent=1 // pred_region
      _
    $region73: #{_moe_forward_jit.1} parent=1 // pred_fallthru
      _
    // Predicated region
    $region74: #{_moe_forward_jit.1} parent=1 // pred_check
      _
    $region75: #{_moe_forward_jit.1} parent=1 // pred_check_branch
      %1120 = sbr.rel (0) target = $region77
    $region76: #{_moe_forward_jit.1} parent=1 // pred_region
      _
    $region77: #{_moe_forward_jit.1} parent=1 // pred_fallthru
      _
    // Predicated region
    $region78: #{_moe_forward_jit.1} parent=1 // pred_check
      _
    $region79: #{_moe_forward_jit.1} parent=1 // pred_check_branch
      %1122 = sbr.rel (0) target = $region81
    $region80: #{_moe_forward_jit.1} parent=1 // pred_region
      _
    $region81: #{_moe_forward_jit.1} parent=1 // pred_fallthru
      _
    // Predicated region
    $region82: #{_moe_forward_jit.1} parent=1 // pred_check
      _
    $region83: #{_moe_forward_jit.1} parent=1 // pred_check_branch
      %1124 = sbr.rel (0) target = $region85
    $region84: #{_moe_forward_jit.1} parent=1 // pred_region
      _
    $region85: #{_moe_forward_jit.1} parent=1 // pred_fallthru
      _
    %1125 = vsyncpa [#allocation3], 1
    %1126 = vsyncpa [#allocation5], 1
    %1127 = vsyncpa [#allocation8], 1
    %1128 = vsyncpa [#allocation11], 1

</llo_original>
